<compile_context>
chip_gen: v5e
topology: v5e:2x2
jax: 0.10.0
libtpu: 0.0.40
codegen_flags: <defaults>
</compile_context>

<pallas_src>
import functools

import jax
import jax.numpy as jnp
from jax import lax
from jax.experimental import pallas as pl
from jax.experimental.pallas import tpu as pltpu


def fused_attention_kernel(x_ref, w_ref, emb_ref, o_ref, *, heads, dim_head, scale):
    # x_ref:   (1, n, c)          one batch element, token layout
    # w_ref:   (c, 3*inner)       qkv 1x1-conv weight as a matmul weight (resident)
    # emb_ref: (n, dim_head)      AbsPosEmb table (resident)
    # o_ref:   (1, n, inner)      lane-dense output (heads concatenated on lanes)
    inner = heads * dim_head

    x = x_ref[0]                      # (n, c)
    w = w_ref[...]                    # (c, 3*inner)
    emb = emb_ref[...]                # (n, dim_head)

    # qkv projection (1x1 conv, no bias) fused into the same kernel.
    qkv = jnp.dot(x, w, preferred_element_type=jnp.float32)   # (n, 3*inner)

    # Column order matches torch: [q | k | v], each head-major (head, dim_head).
    q = qkv[:, :inner] * scale        # scale BEFORE pos-emb logits (matches torch)
    k = qkv[:, inner:2 * inner]
    v = qkv[:, 2 * inner:]

    outs = []
    for h in range(heads):            # static unroll over heads (heads is small)
        sl = slice(h * dim_head, (h + 1) * dim_head)
        q_h = q[:, sl]                                    # (n, d)
        ke_h = k[:, sl] + emb                             # fold AbsPosEmb into K (VPU add)
        v_h = v[:, sl]                                    # (n, d)

        # logits = q_h @ (k_h + emb)^T, contracting last dims (no explicit transpose).
        logits = lax.dot_general(
            q_h, ke_h,
            dimension_numbers=(((1,), (1,)), ((), ())),
            preferred_element_type=jnp.float32)           # (n, n)

        # Online-style stable softmax with deferred normalization.
        m = jnp.max(logits, axis=-1, keepdims=True)
        p = jnp.exp(logits - m)                           # EUP
        denom = jnp.sum(p, axis=-1, keepdims=True)        # XLU reduce

        out_h = jnp.dot(p, v_h, preferred_element_type=jnp.float32)  # (n, d)
        # Normalize the small (n, d) output instead of the (n, n) probs.
        out_h = out_h * pl.reciprocal(denom, approx=False)
        outs.append(out_h)

    # Single lane-dense store: last dim = heads*dim_head = 128 (no masked partial stores).
    o_ref[0] = jnp.concatenate(outs, axis=-1).astype(o_ref.dtype)


def attention_forward(fmap, w_qkv, emb_height, emb_width, *, heads, dim_head):
    b, c, h, w = fmap.shape
    n = h * w
    inner = heads * dim_head
    scale = dim_head ** (-0.5)

    # NCHW -> (b, n, c) token layout (glue).
    x_flat = jnp.transpose(fmap, (0, 2, 3, 1)).reshape(b, n, c)
    # Conv2d weight (3*inner, c, 1, 1) -> (c, 3*inner) matmul weight.
    w_mat = jnp.transpose(w_qkv.reshape(3 * inner, c), (1, 0))
    # AbsPosEmb: emb[x*w + y, :] = height[x] + width[y]
    emb = (emb_height[:, None, :] + emb_width[None, :, :]).reshape(n, dim_head)

    out = pl.pallas_call(
        functools.partial(
            fused_attention_kernel, heads=heads, dim_head=dim_head, scale=scale
        ),
        out_shape=jax.ShapeDtypeStruct((b, n, inner), jnp.float32),
        grid=(b,),
        in_specs=[
            pl.BlockSpec((1, n, c), lambda i: (i, 0, 0)),
            pl.BlockSpec((c, 3 * inner), lambda i: (0, 0)),   # resident weight
            pl.BlockSpec((n, dim_head), lambda i: (0, 0)),    # resident pos-emb
        ],
        out_specs=pl.BlockSpec((1, n, inner), lambda i: (i, 0, 0)),
        compiler_params=pltpu.CompilerParams(
            dimension_semantics=("parallel",)  # b>=2 -> shards across v7x's two TCs
        ),
    )(x_flat, w_mat, emb)

    # (b, n, heads*d) -> (b, heads*d, h, w)  (matches 'b h (x y) d -> b (h d) x y')
    out_nchw = jnp.transpose(out, (0, 2, 1)).reshape(b, inner, h, w)
    return out_nchw


def attention_reference(fmap, w_qkv, emb_height, emb_width, *, heads, dim_head):
    """Pure-JAX reference mirroring the PyTorch forward (full f32 precision)."""
    b, c, h, w = fmap.shape
    n = h * w
    inner = heads * dim_head
    scale = dim_head ** (-0.5)
    hp = lax.Precision.HIGHEST

    x_flat = jnp.transpose(fmap, (0, 2, 3, 1)).reshape(b, n, c)
    qkv = jnp.einsum("bnc,cf->bnf", x_flat,
                     jnp.transpose(w_qkv.reshape(3 * inner, c), (1, 0)), precision=hp)
    q, k, v = jnp.split(qkv, 3, axis=-1)
    to_heads = lambda t: jnp.transpose(t.reshape(b, n, heads, dim_head), (0, 2, 1, 3))
    q, k, v = map(to_heads, (q, k, v))
    q = q * scale
    sim = jnp.einsum("bhid,bhjd->bhij", q, k, precision=hp)
    emb = (emb_height[:, None, :] + emb_width[None, :, :]).reshape(n, dim_head)
    sim = sim + jnp.einsum("bhid,jd->bhij", q, emb, precision=hp)
    attn = jax.nn.softmax(sim, axis=-1)
    out = jnp.einsum("bhij,bhjd->bhid", attn, v, precision=hp)
    return jnp.transpose(out, (0, 1, 3, 2)).reshape(b, heads * dim_head, h, w)


if __name__ == "__main__":
    # Module config (small): dim=4, fmap_size=8, heads=4, dim_head=32, rel_pos_emb=False
    dim = 4
    fmap_size = 8
    heads = 4
    dim_head = 32
    inner = heads * dim_head
    b = 2

    key = jax.random.PRNGKey(0)
    k_x, k_w, k_h, k_w2 = jax.random.split(key, 4)

    fmap = jax.random.normal(k_x, (b, dim, fmap_size, fmap_size), dtype=jnp.float32)
    # Conv2d(dim, inner*3, 1, bias=False) weight: (inner*3, dim, 1, 1)
    w_qkv = jax.random.normal(k_w, (inner * 3, dim, 1, 1), dtype=jnp.float32) * 0.1
    scale = dim_head ** (-0.5)
    emb_height = jax.random.normal(k_h, (fmap_size, dim_head), dtype=jnp.float32) * scale
    emb_width = jax.random.normal(k_w2, (fmap_size, dim_head), dtype=jnp.float32) * scale

    out = attention_forward(fmap, w_qkv, emb_height, emb_width, heads=heads, dim_head=dim_head)
    out = jax.block_until_ready(out)

    ref = attention_reference(fmap, w_qkv, emb_height, emb_width, heads=heads, dim_head=dim_head)
    assert out.shape == (b, inner, fmap_size, fmap_size), out.shape
    max_err = float(jnp.max(jnp.abs(out - ref)))
    assert jnp.allclose(out, ref, atol=2e-3, rtol=2e-3), max_err

    # TODO(synk): RelPosEmb (rel_pos_emb=True branch) not implemented; module default is AbsPosEmb.
    print("KERNEL_OK")
</pallas_src>

<mosaic_0001>
module attributes {stable_mosaic.version = 11 : i64} {
  func.func @fused_attention_kernel(%arg0: i32, %arg1: memref<1x64x4xf32, #tpu.memory_space<vmem>>, %arg2: memref<4x384xf32, #tpu.memory_space<vmem>>, %arg3: memref<64x32xf32, #tpu.memory_space<vmem>>, %arg4: memref<1x64x128xf32, #tpu.memory_space<vmem>>) attributes {dimension_semantics = [#tpu.dimension_semantics<parallel>], iteration_bounds = array<i64: 2>, scalar_prefetch = 0 : i64, scratch_operands = 0 : i64, tpu.core_type = #tpu.core_type<tc>, window_params = [{transform_indices = @transform_0, window_bounds = array<i64: 1, 64, 4>}, {pipeline_mode = #tpu.pipeline_mode<synchronous>, transform_indices = @transform_1, window_bounds = array<i64: 4, 384>}, {pipeline_mode = #tpu.pipeline_mode<synchronous>, transform_indices = @transform_2, window_bounds = array<i64: 64, 32>}, {transform_indices = @transform_3, window_bounds = array<i64: 1, 64, 128>}]} {
    %c0 = arith.constant 0 : index
    %c0_0 = arith.constant 0 : index
    %c0_1 = arith.constant 0 : index
    %0 = vector.load %arg1[%c0, %c0_0, %c0_1] : memref<1x64x4xf32, #tpu.memory_space<vmem>>, vector<1x64x4xf32>
    %1 = vector.shape_cast %0 : vector<1x64x4xf32> to vector<64x4xf32>
    %c0_2 = arith.constant 0 : index
    %c0_3 = arith.constant 0 : index
    %2 = vector.load %arg2[%c0_2, %c0_3] : memref<4x384xf32, #tpu.memory_space<vmem>>, vector<4x384xf32>
    %c0_4 = arith.constant 0 : index
    %c0_5 = arith.constant 0 : index
    %3 = vector.load %arg3[%c0_4, %c0_5] : memref<64x32xf32, #tpu.memory_space<vmem>>, vector<64x32xf32>
    %cst = arith.constant dense<0.000000e+00> : vector<64x384xf32>
    %4 = tpu.matmul %1, %2, %cst {dimension_numbers = #tpu.dot_dimension_numbers<[1], [0], [0], [1], [0, 0, 1, 1], [], []>} : vector<64x4xf32>, vector<4x384xf32>, vector<64x384xf32> -> vector<64x384xf32>
    %5 = vector.extract_strided_slice %4 {offsets = [0, 0], sizes = [64, 128], strides = [1, 1]} : vector<64x384xf32> to vector<64x128xf32>
    %cst_6 = arith.constant 0.176776692 : f32
    %6 = vector.broadcast %cst_6 : f32 to vector<64x128xf32>
    %7 = arith.mulf %5, %6 : vector<64x128xf32>
    %8 = vector.extract_strided_slice %4 {offsets = [0, 128], sizes = [64, 128], strides = [1, 1]} : vector<64x384xf32> to vector<64x128xf32>
    %9 = vector.extract_strided_slice %4 {offsets = [0, 256], sizes = [64, 128], strides = [1, 1]} : vector<64x384xf32> to vector<64x128xf32>
    %10 = vector.extract_strided_slice %7 {offsets = [0, 0], sizes = [64, 32], strides = [1, 1]} : vector<64x128xf32> to vector<64x32xf32>
    %11 = vector.extract_strided_slice %8 {offsets = [0, 0], sizes = [64, 32], strides = [1, 1]} : vector<64x128xf32> to vector<64x32xf32>
    %12 = arith.addf %11, %3 : vector<64x32xf32>
    %13 = vector.extract_strided_slice %9 {offsets = [0, 0], sizes = [64, 32], strides = [1, 1]} : vector<64x128xf32> to vector<64x32xf32>
    %cst_7 = arith.constant dense<0.000000e+00> : vector<64x64xf32>
    %14 = tpu.matmul %10, %12, %cst_7 {dimension_numbers = #tpu.dot_dimension_numbers<[1], [1], [0], [0], [0, 0, 1, 0], [], []>} : vector<64x32xf32>, vector<64x32xf32>, vector<64x64xf32> -> vector<64x64xf32>
    %cst_8 = arith.constant dense<0xFF800000> : vector<64xf32>
    %15 = vector.multi_reduction <maximumf>, %14, %cst_8 [1] : vector<64x64xf32> to vector<64xf32>
    %16 = vector.shape_cast %15 : vector<64xf32> to vector<64x1xf32>
    %17 = vector.broadcast %16 : vector<64x1xf32> to vector<64x64xf32>
    %18 = arith.subf %14, %17 : vector<64x64xf32>
    %19 = math.exp %18 : vector<64x64xf32>
    %cst_9 = arith.constant dense<0.000000e+00> : vector<64xf32>
    %20 = vector.multi_reduction <add>, %19, %cst_9 [1] : vector<64x64xf32> to vector<64xf32>
    %21 = vector.shape_cast %20 : vector<64xf32> to vector<64x1xf32>
    %cst_10 = arith.constant dense<0.000000e+00> : vector<64x32xf32>
    %22 = tpu.matmul %19, %13, %cst_10 {dimension_numbers = #tpu.dot_dimension_numbers<[1], [0], [0], [1], [0, 0, 1, 1], [], []>} : vector<64x64xf32>, vector<64x32xf32>, vector<64x32xf32> -> vector<64x32xf32>
    %23 = tpu.reciprocal %21 : vector<64x1xf32> -> vector<64x1xf32>
    %24 = vector.broadcast %23 : vector<64x1xf32> to vector<64x32xf32>
    %25 = arith.mulf %22, %24 : vector<64x32xf32>
    %26 = vector.extract_strided_slice %7 {offsets = [0, 32], sizes = [64, 32], strides = [1, 1]} : vector<64x128xf32> to vector<64x32xf32>
    %27 = vector.extract_strided_slice %8 {offsets = [0, 32], sizes = [64, 32], strides = [1, 1]} : vector<64x128xf32> to vector<64x32xf32>
    %28 = arith.addf %27, %3 : vector<64x32xf32>
    %29 = vector.extract_strided_slice %9 {offsets = [0, 32], sizes = [64, 32], strides = [1, 1]} : vector<64x128xf32> to vector<64x32xf32>
    %cst_11 = arith.constant dense<0.000000e+00> : vector<64x64xf32>
    %30 = tpu.matmul %26, %28, %cst_11 {dimension_numbers = #tpu.dot_dimension_numbers<[1], [1], [0], [0], [0, 0, 1, 0], [], []>} : vector<64x32xf32>, vector<64x32xf32>, vector<64x64xf32> -> vector<64x64xf32>
    %cst_12 = arith.constant dense<0xFF800000> : vector<64xf32>
    %31 = vector.multi_reduction <maximumf>, %30, %cst_12 [1] : vector<64x64xf32> to vector<64xf32>
    %32 = vector.shape_cast %31 : vector<64xf32> to vector<64x1xf32>
    %33 = vector.broadcast %32 : vector<64x1xf32> to vector<64x64xf32>
    %34 = arith.subf %30, %33 : vector<64x64xf32>
    %35 = math.exp %34 : vector<64x64xf32>
    %cst_13 = arith.constant dense<0.000000e+00> : vector<64xf32>
    %36 = vector.multi_reduction <add>, %35, %cst_13 [1] : vector<64x64xf32> to vector<64xf32>
    %37 = vector.shape_cast %36 : vector<64xf32> to vector<64x1xf32>
    %cst_14 = arith.constant dense<0.000000e+00> : vector<64x32xf32>
    %38 = tpu.matmul %35, %29, %cst_14 {dimension_numbers = #tpu.dot_dimension_numbers<[1], [0], [0], [1], [0, 0, 1, 1], [], []>} : vector<64x64xf32>, vector<64x32xf32>, vector<64x32xf32> -> vector<64x32xf32>
    %39 = tpu.reciprocal %37 : vector<64x1xf32> -> vector<64x1xf32>
    %40 = vector.broadcast %39 : vector<64x1xf32> to vector<64x32xf32>
    %41 = arith.mulf %38, %40 : vector<64x32xf32>
    %42 = vector.extract_strided_slice %7 {offsets = [0, 64], sizes = [64, 32], strides = [1, 1]} : vector<64x128xf32> to vector<64x32xf32>
    %43 = vector.extract_strided_slice %8 {offsets = [0, 64], sizes = [64, 32], strides = [1, 1]} : vector<64x128xf32> to vector<64x32xf32>
    %44 = arith.addf %43, %3 : vector<64x32xf32>
    %45 = vector.extract_strided_slice %9 {offsets = [0, 64], sizes = [64, 32], strides = [1, 1]} : vector<64x128xf32> to vector<64x32xf32>
    %cst_15 = arith.constant dense<0.000000e+00> : vector<64x64xf32>
    %46 = tpu.matmul %42, %44, %cst_15 {dimension_numbers = #tpu.dot_dimension_numbers<[1], [1], [0], [0], [0, 0, 1, 0], [], []>} : vector<64x32xf32>, vector<64x32xf32>, vector<64x64xf32> -> vector<64x64xf32>
    %cst_16 = arith.constant dense<0xFF800000> : vector<64xf32>
    %47 = vector.multi_reduction <maximumf>, %46, %cst_16 [1] : vector<64x64xf32> to vector<64xf32>
    %48 = vector.shape_cast %47 : vector<64xf32> to vector<64x1xf32>
    %49 = vector.broadcast %48 : vector<64x1xf32> to vector<64x64xf32>
    %50 = arith.subf %46, %49 : vector<64x64xf32>
    %51 = math.exp %50 : vector<64x64xf32>
    %cst_17 = arith.constant dense<0.000000e+00> : vector<64xf32>
    %52 = vector.multi_reduction <add>, %51, %cst_17 [1] : vector<64x64xf32> to vector<64xf32>
    %53 = vector.shape_cast %52 : vector<64xf32> to vector<64x1xf32>
    %cst_18 = arith.constant dense<0.000000e+00> : vector<64x32xf32>
    %54 = tpu.matmul %51, %45, %cst_18 {dimension_numbers = #tpu.dot_dimension_numbers<[1], [0], [0], [1], [0, 0, 1, 1], [], []>} : vector<64x64xf32>, vector<64x32xf32>, vector<64x32xf32> -> vector<64x32xf32>
    %55 = tpu.reciprocal %53 : vector<64x1xf32> -> vector<64x1xf32>
    %56 = vector.broadcast %55 : vector<64x1xf32> to vector<64x32xf32>
    %57 = arith.mulf %54, %56 : vector<64x32xf32>
    %58 = vector.extract_strided_slice %7 {offsets = [0, 96], sizes = [64, 32], strides = [1, 1]} : vector<64x128xf32> to vector<64x32xf32>
    %59 = vector.extract_strided_slice %8 {offsets = [0, 96], sizes = [64, 32], strides = [1, 1]} : vector<64x128xf32> to vector<64x32xf32>
    %60 = arith.addf %59, %3 : vector<64x32xf32>
    %61 = vector.extract_strided_slice %9 {offsets = [0, 96], sizes = [64, 32], strides = [1, 1]} : vector<64x128xf32> to vector<64x32xf32>
    %cst_19 = arith.constant dense<0.000000e+00> : vector<64x64xf32>
    %62 = tpu.matmul %58, %60, %cst_19 {dimension_numbers = #tpu.dot_dimension_numbers<[1], [1], [0], [0], [0, 0, 1, 0], [], []>} : vector<64x32xf32>, vector<64x32xf32>, vector<64x64xf32> -> vector<64x64xf32>
    %cst_20 = arith.constant dense<0xFF800000> : vector<64xf32>
    %63 = vector.multi_reduction <maximumf>, %62, %cst_20 [1] : vector<64x64xf32> to vector<64xf32>
    %64 = vector.shape_cast %63 : vector<64xf32> to vector<64x1xf32>
    %65 = vector.broadcast %64 : vector<64x1xf32> to vector<64x64xf32>
    %66 = arith.subf %62, %65 : vector<64x64xf32>
    %67 = math.exp %66 : vector<64x64xf32>
    %cst_21 = arith.constant dense<0.000000e+00> : vector<64xf32>
    %68 = vector.multi_reduction <add>, %67, %cst_21 [1] : vector<64x64xf32> to vector<64xf32>
    %69 = vector.shape_cast %68 : vector<64xf32> to vector<64x1xf32>
    %cst_22 = arith.constant dense<0.000000e+00> : vector<64x32xf32>
    %70 = tpu.matmul %67, %61, %cst_22 {dimension_numbers = #tpu.dot_dimension_numbers<[1], [0], [0], [1], [0, 0, 1, 1], [], []>} : vector<64x64xf32>, vector<64x32xf32>, vector<64x32xf32> -> vector<64x32xf32>
    %71 = tpu.reciprocal %69 : vector<64x1xf32> -> vector<64x1xf32>
    %72 = vector.broadcast %71 : vector<64x1xf32> to vector<64x32xf32>
    %73 = arith.mulf %70, %72 : vector<64x32xf32>
    %74 = tpu.concatenate %25, %41, %57, %73 in 1 : vector<64x32xf32>, vector<64x32xf32>, vector<64x32xf32>, vector<64x32xf32> -> vector<64x128xf32>
    %c0_23 = arith.constant 0 : index
    %c0_24 = arith.constant 0 : index
    %c0_25 = arith.constant 0 : index
    %75 = vector.load %arg4[%c0_23, %c0_24, %c0_25] : memref<1x64x128xf32, #tpu.memory_space<vmem>>, vector<1x64x128xf32>
    %76 = vector.shape_cast %75 : vector<1x64x128xf32> to vector<64x128xf32>
    %77 = vector.shape_cast %74 : vector<64x128xf32> to vector<1x64x128xf32>
    tpu.vector_store %arg4[%c0_23, %c0_24, %c0_25], %77 {strides = array<i32>} : memref<1x64x128xf32, #tpu.memory_space<vmem>>, vector<1x64x128xf32>,
    return
  }
  func.func @transform_0(%arg0: i32) -> (i32, i32, i32) {
    %c0_i32 = arith.constant 0 : i32
    %c0_i32_0 = arith.constant 0 : i32
    %c0_i32_1 = arith.constant 0 : i32
    return %arg0, %c0_i32, %c0_i32_0 : i32, i32, i32
  }
  func.func @transform_1(%arg0: i32) -> (i32, i32) {
    %c0_i32 = arith.constant 0 : i32
    %c0_i32_0 = arith.constant 0 : i32
    %c0_i32_1 = arith.constant 0 : i32
    return %c0_i32, %c0_i32_0 : i32, i32
  }
  func.func @transform_2(%arg0: i32) -> (i32, i32) {
    %c0_i32 = arith.constant 0 : i32
    %c0_i32_0 = arith.constant 0 : i32
    %c0_i32_1 = arith.constant 0 : i32
    return %c0_i32, %c0_i32_0 : i32, i32
  }
  func.func @transform_3(%arg0: i32) -> (i32, i32, i32) {
    %c0_i32 = arith.constant 0 : i32
    %c0_i32_0 = arith.constant 0 : i32
    %c0_i32_1 = arith.constant 0 : i32
    return %arg0, %c0_i32, %c0_i32_0 : i32, i32, i32
  }
}

</mosaic_0001>

<llo_original>
// kernel: tpu_custom_call.1
$region0: #{tpu_custom_call.1}
  #allocation0 [shape = 'u32[]', space=smem, size = 0x4, offset = 0x4, fixed_abs, tag = 'smem constant byte address 0x4 - core index']
  #allocation1 [shape = 'u32[72,128]{1,0:T(1,128)}', space=vmem, size = 0x9000, scoped, tag = 'internal scratch']
  %s0 = inlined_call_operand.vmem [shape: f32[2,64,4], index: 0, kind: input, shape index: {}]
  %s1 = inlined_call_operand.vmem [shape: f32[4,384], index: 1, kind: input, shape index: {}]
  %s2 = inlined_call_operand.vmem [shape: f32[64,32], index: 2, kind: input, shape index: {}]
  %s3 = inlined_call_operand.hbm [shape: f32[2,64,128], index: 3, kind: output, shape index: {}]
  %s4 = sld [smem:[#allocation0]]
  $region45: #{tpu_custom_call.1} parent=0
    _
  %s6 = ssub.s32 1, %s4
  %s7 = scalar_select 0, %s6, %s4
  $region1: #{tpu_custom_call.1} parent=0
    #allocation2 [shape = 'u8[65536]{0}', space=vmem, size = 0x10000, scoped, tag = 'output window, operand 0']
    #allocation3 [shape = 's32[2]{0}', space=sflag, size = 0x8, scoped, tag = 'scoped memory for tpu_custom_call.1']
    %8 = vsyncpa [#allocation3], 0
    %s9 = scalar_lea.sflag [#allocation3], 1
    %10 = vsyncpa %s9, 0
    loop: start=0, step=1, limit=4
    $region2: #{tpu_custom_call.1} parent=1 // loop_pre_header
      _
    $region3: #{tpu_custom_call.1} parent=1 // loop_header
      %s12 = sphi 0, %s16
      %p13 = scmp.ge.s32.totalorder %s12, 4
      %s22 = sphi 0, %s24
      %s25 = sphi 0, %s22
      %s26 = sphi 0, %s25
      %s42 = sphi 0, %s26
      %s46 = sphi 0, %s46
      %s48 = sphi 0, %s46
      %s49 = sphi 0, %s48
      %s63 = sphi 0, %s49
      %s67 = sphi 0, %s67
      %s69 = sphi 0, %s67
      %s70 = sphi 0, %s69
      %s84 = sphi 0, %s70
      %s90 = sphi 0, %s92
      %s93 = sphi 0, %s90
      %s94 = sphi 0, %s93
      %s110 = sphi 0, %s94
    $region4: #{tpu_custom_call.1} parent=1 // loop_header_branch
      %15 = sbr.rel (%p13) target = $region8
    $region5: #{tpu_custom_call.1} parent=1 // loop_body
      %s17 = ssub.s32 %s12, 1
      %s18 = ssub.s32 %s12, 2
      %s19 = sadd.s32 %s12, 1
      %s20 = ssub.s32 %s12, %s19
      %p21 = scmp.eq.s32.totalorder %s20, 0
      %s23 = sadd.s32 %s22, 1
      %s24 = scalar_select %p21, %s22, %s23
      %p27 = pneg %p21
      %p28 = scmp.eq.s32.totalorder %s12, 1
      %p29 = por %p27, %p28
      %p30 = scmp.ne.s32.totalorder %s22, %s25
      %p31 = scmp.eq.s32.totalorder %s12, 0
      %p32 = por %p30, %p31
      %p33 = scmp.ne.s32.totalorder %s22, %s25
      %p34 = scmp.eq.s32.totalorder %s17, 1
      %p35 = por %p33, %p34
      %p36 = scmp.ne.s32.totalorder %s25, %s26
      %p37 = scmp.eq.s32.totalorder %s17, 0
      %p38 = por %p36, %p37
      %p39 = scmp.ne.s32.totalorder %s25, %s26
      %p40 = scmp.eq.s32.totalorder %s18, 1
      %p41 = por %p39, %p40
      %p43 = scmp.ne.s32.totalorder %s26, %s42
      %p44 = scmp.eq.s32.totalorder %s18, 0
      %p45 = por %p43, %p44
      %s47 = sadd.s32 %s46, 1
      %p50 = scmp.eq.s32.totalorder %s12, 1
      %p51 = scmp.ne.s32.totalorder %s46, %s48
      %p52 = scmp.eq.s32.totalorder %s12, 0
      %p53 = por %p51, %p52
      %p54 = scmp.ne.s32.totalorder %s46, %s48
      %p55 = scmp.eq.s32.totalorder %s17, 1
      %p56 = por %p54, %p55
      %p57 = scmp.ne.s32.totalorder %s48, %s49
      %p58 = scmp.eq.s32.totalorder %s17, 0
      %p59 = por %p57, %p58
      %p60 = scmp.ne.s32.totalorder %s48, %s49
      %p61 = scmp.eq.s32.totalorder %s18, 1
      %p62 = por %p60, %p61
      %p64 = scmp.ne.s32.totalorder %s49, %s63
      %p65 = scmp.eq.s32.totalorder %s18, 0
      %p66 = por %p64, %p65
      %s68 = sadd.s32 %s67, 1
      %p71 = scmp.eq.s32.totalorder %s12, 1
      %p72 = scmp.ne.s32.totalorder %s67, %s69
      %p73 = scmp.eq.s32.totalorder %s12, 0
      %p74 = por %p72, %p73
      %p75 = scmp.ne.s32.totalorder %s67, %s69
      %p76 = scmp.eq.s32.totalorder %s17, 1
      %p77 = por %p75, %p76
      %p78 = scmp.ne.s32.totalorder %s69, %s70
      %p79 = scmp.eq.s32.totalorder %s17, 0
      %p80 = por %p78, %p79
      %p81 = scmp.ne.s32.totalorder %s69, %s70
      %p82 = scmp.eq.s32.totalorder %s18, 1
      %p83 = por %p81, %p82
      %p85 = scmp.ne.s32.totalorder %s70, %s84
      %p86 = scmp.eq.s32.totalorder %s18, 0
      %p87 = por %p85, %p86
      %s88 = ssub.s32 %s12, %s19
      %p89 = scmp.eq.s32.totalorder %s88, 0
      %s91 = sadd.s32 %s90, 1
      %s92 = scalar_select %p89, %s90, %s91
      %p95 = pneg %p89
      %p96 = scmp.eq.s32.totalorder %s12, 1
      %p97 = por %p95, %p96
      %p98 = scmp.ne.s32.totalorder %s90, %s93
      %p99 = scmp.eq.s32.totalorder %s12, 0
      %p100 = por %p98, %p99
      %p101 = scmp.ne.s32.totalorder %s90, %s93
      %p102 = scmp.eq.s32.totalorder %s17, 1
      %p103 = por %p101, %p102
      %p104 = scmp.ne.s32.totalorder %s93, %s94
      %p105 = scmp.eq.s32.totalorder %s17, 0
      %p106 = por %p104, %p105
      %p107 = scmp.ne.s32.totalorder %s93, %s94
      %p108 = scmp.eq.s32.totalorder %s18, 1
      %p109 = por %p107, %p108
      %p111 = scmp.ne.s32.totalorder %s94, %s110
      %p112 = scmp.eq.s32.totalorder %s18, 0
      %p113 = por %p111, %p112
      %p114 = scmp.le.s32.totalorder 1, %s12
      %p115 = scmp.lt.s32.totalorder %s12, 3
      %p116 = pnand %p114, %p115
      %p117 = pneg %p116
      // Predicated region
      $region9: #{tpu_custom_call.1} parent=5 // pred_check
        _
      $region10: #{tpu_custom_call.1} parent=5 // pred_check_branch
        %119 = sbr.rel (%p116) target = $region12
      $region11: #{tpu_custom_call.1} parent=5 // pred_region
        %s120 = ssub.s32 %s12, 1
        // Predicated region
        $region13: #{tpu_custom_call.1} parent=11 // pred_check
          %p121 = pneg %p59
        $region14: #{tpu_custom_call.1} parent=11 // pred_check_branch
          %123 = sbr.rel (%p121) target = $region16
        $region15: #{tpu_custom_call.1} parent=11 // pred_region
          _
        $region16: #{tpu_custom_call.1} parent=11 // pred_fallthru
          _
        // Predicated region
        $region17: #{tpu_custom_call.1} parent=11 // pred_check
          %p124 = pneg %p80
        $region18: #{tpu_custom_call.1} parent=11 // pred_check_branch
          %126 = sbr.rel (%p124) target = $region20
        $region19: #{tpu_custom_call.1} parent=11 // pred_region
          _
        $region20: #{tpu_custom_call.1} parent=11 // pred_fallthru
          _
      $region12: #{tpu_custom_call.1} parent=5 // pred_fallthru
        _
      %p127 = scmp.lt.s32.totalorder %s12, 2
      // Predicated region
      $region21: #{tpu_custom_call.1} parent=5 // pred_check
        %p128 = pneg %p127
      $region22: #{tpu_custom_call.1} parent=5 // pred_check_branch
        %130 = sbr.rel (%p128) target = $region24
      $region23: #{tpu_custom_call.1} parent=5 // pred_region
        // Predicated region
        $region25: #{tpu_custom_call.1} parent=23 // pred_check
          %p131 = pneg %p32
        $region26: #{tpu_custom_call.1} parent=23 // pred_check_branch
          %133 = sbr.rel (%p131) target = $region28
        $region27: #{tpu_custom_call.1} parent=23 // pred_region
          %p134 = scmp.lt.s32.totalorder %s12, 1
          %s135 = scalar_select %p134, %s12, 1
          %s136 = smul.addr %s135, 8
          %s137 = smul.addr %s136, 8
          %s138 = scalar_lea.vmem %s0, %s137
        $region28: #{tpu_custom_call.1} parent=23 // pred_fallthru
          _
      $region24: #{tpu_custom_call.1} parent=5 // pred_fallthru
        _
      %p139 = scmp.le.s32.totalorder 1, %s12
      %p140 = scmp.lt.s32.totalorder %s12, 3
      %p141 = pnand %p139, %p140
      %p142 = pneg %p141
      // Predicated region
      $region29: #{tpu_custom_call.1} parent=5 // pred_check
        _
      $region30: #{tpu_custom_call.1} parent=5 // pred_check_branch
        %144 = sbr.rel (%p141) target = $region32
      $region31: #{tpu_custom_call.1} parent=5 // pred_region
        %s145 = ssub.s32 %s12, 1
        %p146 = scmp.lt.s32.totalorder %s17, 1
        %s147 = scalar_select %p146, %s17, 1
        %s148 = smul.addr %s147, 8
        %s149 = smul.addr %s148, 8
        %s150 = scalar_lea.vmem %s0, %s149
        %p151 = pneg %p38
        %p152 = pneg %p35
        %p153 = pneg %p59
        %p154 = pneg %p56
        %p155 = pneg %p80
        %p156 = pneg %p77
        %p157 = pneg %p106
        %p158 = pneg %p103
        %s159 = sand.u32 %s93, 1
        %s160 = scalar_lea.sflag [#allocation3], %s159
        %s161 = sand.u32 %s93, 1
        %s162 = smul.addr %s161, 64
        %s163 = scalar_lea.vmem [#allocation2], %s162
        %p164 = scmp.lt.s32.totalorder %s17, 1
        %s165 = scalar_select %p164, %s17, 1
        %s166 = smul.addr %s165, 8
        %s167 = smul.addr %s166, 8
        %s168 = scalar_lea.vmem %s0, %s167
        %v169 = vld [vmem:[%s168] sm:$0xff]
        %v170 = vld [vmem:[%s168 + $0x8] sm:$0xff]
        %v171 = vld [vmem:[%s168 + $0x10] sm:$0xff]
        %v172 = vld [vmem:[%s168 + $0x18] sm:$0xff]
        %v173 = vld [vmem:[%s168 + $0x20] sm:$0xff]
        %v174 = vld [vmem:[%s168 + $0x28] sm:$0xff]
        %v175 = vld [vmem:[%s168 + $0x30] sm:$0xff]
        %v176 = vld [vmem:[%s168 + $0x38] sm:$0xff]
        %v177 = vld [vmem:[%s1] sm:$0xff]
        %v178 = vld [vmem:[%s1 + $0x8] sm:$0xf]
        %v179 = vld [vmem:[%s2] sm:$0xff]
        %v180 = vld [vmem:[%s2 + $0x8] sm:$0xff]
        %v181 = vld [vmem:[%s2 + $0x10] sm:$0xff]
        %v182 = vld [vmem:[%s2 + $0x18] sm:$0xff]
        %v183 = vld [vmem:[%s2 + $0x20] sm:$0xff]
        %v184 = vld [vmem:[%s2 + $0x28] sm:$0xff]
        %v185 = vld [vmem:[%s2 + $0x30] sm:$0xff]
        %v186 = vld [vmem:[%s2 + $0x38] sm:$0xff]
        %189 = vst [vmem:[#allocation1] ss:$2 sm:$0xff] %v177
        %s190 = scalar_lea.vmem [#allocation1], 16
        %191 = vst [vmem:[%s190] ss:$2 sm:$0xff] %v178
        %v192 = vld.sshfl [vmem:[#allocation1] sm:$0xff pattern:$0x75316420]
        %v193 = vld.sshfl [vmem:[#allocation1 + $0x8] sm:$0xff pattern:$0x75316420]
        %v194 = vld.sshfl [vmem:[#allocation1 + $0x10] sm:$0xff pattern:$0x75316420]
        %vm195 = vcmask 31744
        %v197 = vsel %vm195, %v169, 0
        %v200 = vsel %vm195, %v170, 0
        %v203 = vsel %vm195, %v171, 0
        %v206 = vsel %vm195, %v172, 0
        %v209 = vsel %vm195, %v173, 0
        %v212 = vsel %vm195, %v174, 0
        %v215 = vsel %vm195, %v175, 0
        %v218 = vsel %vm195, %v176, 0
        %vm220 = vcmask 1043456
        %v221 = vsel %vm220, %v192, 0
        %v223 = vsel %vm220, %v193, 0
        %v225 = vsel %vm220, %v194, 0
        %227 = vmatpush.msra.mxu0 0.0
        %228 = vmatpush.msra.mxu0 0.0
        %229 = vmatpush.msra.mxu0 0.0
        %230 = vmatpush.msra.mxu0 0.0
        %231 = vmatpush.msra.mxu0 0.0
        %232 = vmatpush.msra.mxu0 0.0
        %233 = vmatpush.msra.mxu0 0.0
        %234 = vmatpush.msra.mxu0 0.0
        %235 = vmatpush.msra.mxu0 0.0
        %236 = vmatpush.msra.mxu0 0.0
        %237 = vmatpush.msra.mxu0 0.0
        %238 = vmatpush.msra.mxu0 0.0
        %239 = vmatpush.msra.mxu0 0.0
        %240 = vmatpush.msra.mxu0 0.0
        %241 = vmatpush.msra.mxu0 0.0
        %242 = vmatpush.msra.mxu0 %v221
        %243 = vmatmul.f32.gmra.mxu0 %v197
        %v244 = vpop.f32.mrf.mxu0
        %v245 = vadd.f32 0.0, %v244
        %246 = vmatmul.f32.gmra.mxu0 %v200
        %v247 = vpop.f32.mrf.mxu0
        %v248 = vadd.f32 0.0, %v247
        %249 = vmatmul.f32.gmra.mxu0 %v203
        %v250 = vpop.f32.mrf.mxu0
        %v251 = vadd.f32 0.0, %v250
        %252 = vmatmul.f32.gmra.mxu0 %v206
        %v253 = vpop.f32.mrf.mxu0
        %v254 = vadd.f32 0.0, %v253
        %255 = vmatmul.f32.gmra.mxu0 %v209
        %v256 = vpop.f32.mrf.mxu0
        %v257 = vadd.f32 0.0, %v256
        %258 = vmatmul.f32.gmra.mxu0 %v212
        %v259 = vpop.f32.mrf.mxu0
        %v260 = vadd.f32 0.0, %v259
        %261 = vmatmul.f32.gmra.mxu0 %v215
        %v262 = vpop.f32.mrf.mxu0
        %v263 = vadd.f32 0.0, %v262
        %264 = vmatmul.f32.gmra.mxu0 %v218
        %v265 = vpop.f32.mrf.mxu0
        %v266 = vadd.f32 0.0, %v265
        %267 = vdwg.mxu0
        %268 = vmatpush.msra.mxu0 0.0
        %269 = vmatpush.msra.mxu0 0.0
        %270 = vmatpush.msra.mxu0 0.0
        %271 = vmatpush.msra.mxu0 0.0
        %272 = vmatpush.msra.mxu0 0.0
        %273 = vmatpush.msra.mxu0 0.0
        %274 = vmatpush.msra.mxu0 0.0
        %275 = vmatpush.msra.mxu0 0.0
        %276 = vmatpush.msra.mxu0 0.0
        %277 = vmatpush.msra.mxu0 0.0
        %278 = vmatpush.msra.mxu0 0.0
        %279 = vmatpush.msra.mxu0 0.0
        %280 = vmatpush.msra.mxu0 0.0
        %281 = vmatpush.msra.mxu0 0.0
        %282 = vmatpush.msra.mxu0 0.0
        %283 = vmatpush.msra.mxu0 %v223
        %284 = vmatmul.f32.gmra.mxu0 %v197
        %v285 = vpop.f32.mrf.mxu0
        %v286 = vadd.f32 0.0, %v285
        %287 = vmatmul.f32.gmra.mxu0 %v200
        %v288 = vpop.f32.mrf.mxu0
        %v289 = vadd.f32 0.0, %v288
        %290 = vmatmul.f32.gmra.mxu0 %v203
        %v291 = vpop.f32.mrf.mxu0
        %v292 = vadd.f32 0.0, %v291
        %293 = vmatmul.f32.gmra.mxu0 %v206
        %v294 = vpop.f32.mrf.mxu0
        %v295 = vadd.f32 0.0, %v294
        %296 = vmatmul.f32.gmra.mxu0 %v209
        %v297 = vpop.f32.mrf.mxu0
        %v298 = vadd.f32 0.0, %v297
        %299 = vmatmul.f32.gmra.mxu0 %v212
        %v300 = vpop.f32.mrf.mxu0
        %v301 = vadd.f32 0.0, %v300
        %302 = vmatmul.f32.gmra.mxu0 %v215
        %v303 = vpop.f32.mrf.mxu0
        %v304 = vadd.f32 0.0, %v303
        %305 = vmatmul.f32.gmra.mxu0 %v218
        %v306 = vpop.f32.mrf.mxu0
        %v307 = vadd.f32 0.0, %v306
        %308 = vdwg.mxu0
        %309 = vmatpush.msra.mxu0 0.0
        %310 = vmatpush.msra.mxu0 0.0
        %311 = vmatpush.msra.mxu0 0.0
        %312 = vmatpush.msra.mxu0 0.0
        %313 = vmatpush.msra.mxu0 0.0
        %314 = vmatpush.msra.mxu0 0.0
        %315 = vmatpush.msra.mxu0 0.0
        %316 = vmatpush.msra.mxu0 0.0
        %317 = vmatpush.msra.mxu0 0.0
        %318 = vmatpush.msra.mxu0 0.0
        %319 = vmatpush.msra.mxu0 0.0
        %320 = vmatpush.msra.mxu0 0.0
        %321 = vmatpush.msra.mxu0 0.0
        %322 = vmatpush.msra.mxu0 0.0
        %323 = vmatpush.msra.mxu0 0.0
        %324 = vmatpush.msra.mxu0 %v225
        %325 = vmatmul.f32.gmra.mxu0 %v197
        %v326 = vpop.f32.mrf.mxu0
        %v327 = vadd.f32 0.0, %v326
        %328 = vmatmul.f32.gmra.mxu0 %v200
        %v329 = vpop.f32.mrf.mxu0
        %v330 = vadd.f32 0.0, %v329
        %331 = vmatmul.f32.gmra.mxu0 %v203
        %v332 = vpop.f32.mrf.mxu0
        %v333 = vadd.f32 0.0, %v332
        %334 = vmatmul.f32.gmra.mxu0 %v206
        %v335 = vpop.f32.mrf.mxu0
        %v336 = vadd.f32 0.0, %v335
        %337 = vmatmul.f32.gmra.mxu0 %v209
        %v338 = vpop.f32.mrf.mxu0
        %v339 = vadd.f32 0.0, %v338
        %340 = vmatmul.f32.gmra.mxu0 %v212
        %v341 = vpop.f32.mrf.mxu0
        %v342 = vadd.f32 0.0, %v341
        %343 = vmatmul.f32.gmra.mxu0 %v215
        %v344 = vpop.f32.mrf.mxu0
        %v345 = vadd.f32 0.0, %v344
        %346 = vmatmul.f32.gmra.mxu0 %v218
        %v347 = vpop.f32.mrf.mxu0
        %v348 = vadd.f32 0.0, %v347
        %349 = vdwg.mxu0
        %v350 = vmul.f32 %v245, 0.17677669
        %v351 = vmul.f32 %v248, 0.17677669
        %v352 = vmul.f32 %v251, 0.17677669
        %v353 = vmul.f32 %v254, 0.17677669
        %v354 = vmul.f32 %v257, 0.17677669
        %v355 = vmul.f32 %v260, 0.17677669
        %v356 = vmul.f32 %v263, 0.17677669
        %v357 = vmul.f32 %v266, 0.17677669
        %v358 = vadd.f32 %v286, %v179
        %v359 = vadd.f32 %v289, %v180
        %v360 = vadd.f32 %v292, %v181
        %v361 = vadd.f32 %v295, %v182
        %v362 = vadd.f32 %v298, %v183
        %v363 = vadd.f32 %v301, %v184
        %v364 = vadd.f32 %v304, %v185
        %v365 = vadd.f32 %v307, %v186
        %vm366 = vcmask 261120
        %v368 = vsel %vm366, %v350, 0
        %v371 = vsel %vm366, %v351, 0
        %v374 = vsel %vm366, %v352, 0
        %v377 = vsel %vm366, %v353, 0
        %v380 = vsel %vm366, %v354, 0
        %v383 = vsel %vm366, %v355, 0
        %v386 = vsel %vm366, %v356, 0
        %v389 = vsel %vm366, %v357, 0
        %v392 = vsel %vm366, %v358, 0
        %v395 = vsel %vm366, %v359, 0
        %v398 = vsel %vm366, %v360, 0
        %v401 = vsel %vm366, %v361, 0
        %v404 = vsel %vm366, %v362, 0
        %v407 = vsel %vm366, %v363, 0
        %v410 = vsel %vm366, %v364, 0
        %v413 = vsel %vm366, %v365, 0
        %415 = vmatpush.xpose.msra.mxu0 0.0
        %416 = vmatpush.xpose.msra.mxu0 0.0
        %417 = vmatpush.xpose.msra.mxu0 0.0
        %418 = vmatpush.xpose.msra.mxu0 0.0
        %419 = vmatpush.xpose.msra.mxu0 0.0
        %420 = vmatpush.xpose.msra.mxu0 0.0
        %421 = vmatpush.xpose.msra.mxu0 0.0
        %422 = vmatpush.xpose.msra.mxu0 0.0
        %423 = vmatpush.xpose.msra.mxu0 %v413
        %424 = vmatpush.xpose.msra.mxu0 %v410
        %425 = vmatpush.xpose.msra.mxu0 %v407
        %426 = vmatpush.xpose.msra.mxu0 %v404
        %427 = vmatpush.xpose.msra.mxu0 %v401
        %428 = vmatpush.xpose.msra.mxu0 %v398
        %429 = vmatpush.xpose.msra.mxu0 %v395
        %430 = vmatpush.xpose.msra.mxu0 %v392
        %431 = vmatmul.f32.gmra.mxu0 %v368
        %v432 = vpop.f32.mrf.mxu0
        %v433 = vadd.f32 0.0, %v432
        %434 = vmatmul.f32.gmra.mxu0 %v371
        %v435 = vpop.f32.mrf.mxu0
        %v436 = vadd.f32 0.0, %v435
        %437 = vmatmul.f32.gmra.mxu0 %v374
        %v438 = vpop.f32.mrf.mxu0
        %v439 = vadd.f32 0.0, %v438
        %440 = vmatmul.f32.gmra.mxu0 %v377
        %v441 = vpop.f32.mrf.mxu0
        %v442 = vadd.f32 0.0, %v441
        %443 = vmatmul.f32.gmra.mxu0 %v380
        %v444 = vpop.f32.mrf.mxu0
        %v445 = vadd.f32 0.0, %v444
        %446 = vmatmul.f32.gmra.mxu0 %v383
        %v447 = vpop.f32.mrf.mxu0
        %v448 = vadd.f32 0.0, %v447
        %449 = vmatmul.f32.gmra.mxu0 %v386
        %v450 = vpop.f32.mrf.mxu0
        %v451 = vadd.f32 0.0, %v450
        %452 = vmatmul.f32.gmra.mxu0 %v389
        %v453 = vpop.f32.mrf.mxu0
        %v454 = vadd.f32 0.0, %v453
        %455 = vdwg.mxu0
        %vm456 = vcmask 523264
        %v457 = vsel %vm456, %v433, -inf
        %458 = vmax.xlane.f32.xlu0 %v457
        %v459 = vpop.xlane.xlu0 %458
        %v460 = vsel %vm456, %v436, -inf
        %461 = vmax.xlane.f32.xlu0 %v460
        %v462 = vpop.xlane.xlu0 %461
        %v463 = vsel %vm456, %v439, -inf
        %464 = vmax.xlane.f32.xlu0 %v463
        %v465 = vpop.xlane.xlu0 %464
        %v466 = vsel %vm456, %v442, -inf
        %467 = vmax.xlane.f32.xlu0 %v466
        %v468 = vpop.xlane.xlu0 %467
        %v469 = vsel %vm456, %v445, -inf
        %470 = vmax.xlane.f32.xlu0 %v469
        %v471 = vpop.xlane.xlu0 %470
        %v472 = vsel %vm456, %v448, -inf
        %473 = vmax.xlane.f32.xlu0 %v472
        %v474 = vpop.xlane.xlu0 %473
        %v475 = vsel %vm456, %v451, -inf
        %476 = vmax.xlane.f32.xlu0 %v475
        %v477 = vpop.xlane.xlu0 %476
        %v478 = vsel %vm456, %v454, -inf
        %479 = vmax.xlane.f32.xlu0 %v478
        %v480 = vpop.xlane.xlu0 %479
        %v481 = vsub.f32 %v433, %v459
        %v482 = vsub.f32 %v436, %v462
        %v483 = vsub.f32 %v439, %v465
        %v484 = vsub.f32 %v442, %v468
        %v485 = vsub.f32 %v445, %v471
        %v486 = vsub.f32 %v448, %v474
        %v487 = vsub.f32 %v451, %v477
        %v488 = vsub.f32 %v454, %v480
        %v489 = vmul.f32 %v481, 1.442695
        %v490 = vpow.pop %v489
        %v491 = vmul.f32 %v482, 1.442695
        %v492 = vpow.pop %v491
        %v493 = vmul.f32 %v483, 1.442695
        %v494 = vpow.pop %v493
        %v495 = vmul.f32 %v484, 1.442695
        %v496 = vpow.pop %v495
        %v497 = vmul.f32 %v485, 1.442695
        %v498 = vpow.pop %v497
        %v499 = vmul.f32 %v486, 1.442695
        %v500 = vpow.pop %v499
        %v501 = vmul.f32 %v487, 1.442695
        %v502 = vpow.pop %v501
        %v503 = vmul.f32 %v488, 1.442695
        %v504 = vpow.pop %v503
        %v505 = vsel %vm456, %v490, 0.0
        %506 = vadd.xlane.f32.xlu0 %v505
        %v507 = vpop.xlane.xlu0 %506
        %v508 = vsel %vm456, %v492, 0.0
        %509 = vadd.xlane.f32.xlu0 %v508
        %v510 = vpop.xlane.xlu0 %509
        %v511 = vsel %vm456, %v494, 0.0
        %512 = vadd.xlane.f32.xlu0 %v511
        %v513 = vpop.xlane.xlu0 %512
        %v514 = vsel %vm456, %v496, 0.0
        %515 = vadd.xlane.f32.xlu0 %v514
        %v516 = vpop.xlane.xlu0 %515
        %v517 = vsel %vm456, %v498, 0.0
        %518 = vadd.xlane.f32.xlu0 %v517
        %v519 = vpop.xlane.xlu0 %518
        %v520 = vsel %vm456, %v500, 0.0
        %521 = vadd.xlane.f32.xlu0 %v520
        %v522 = vpop.xlane.xlu0 %521
        %v523 = vsel %vm456, %v502, 0.0
        %524 = vadd.xlane.f32.xlu0 %v523
        %v525 = vpop.xlane.xlu0 %524
        %v526 = vsel %vm456, %v504, 0.0
        %527 = vadd.xlane.f32.xlu0 %v526
        %v528 = vpop.xlane.xlu0 %527
        %v530 = vsel %vm456, %v490, 0
        %v533 = vsel %vm456, %v492, 0
        %v536 = vsel %vm456, %v494, 0
        %v539 = vsel %vm456, %v496, 0
        %v542 = vsel %vm456, %v498, 0
        %v545 = vsel %vm456, %v500, 0
        %v548 = vsel %vm456, %v502, 0
        %v551 = vsel %vm456, %v504, 0
        %553 = vmatpush.msra.mxu0 0.0
        %554 = vmatpush.msra.mxu0 0.0
        %555 = vmatpush.msra.mxu0 0.0
        %556 = vmatpush.msra.mxu0 0.0
        %557 = vmatpush.msra.mxu0 0.0
        %558 = vmatpush.msra.mxu0 0.0
        %559 = vmatpush.msra.mxu0 0.0
        %560 = vmatpush.msra.mxu0 0.0
        %561 = vmatpush.msra.mxu0 %v348
        %562 = vmatpush.msra.mxu0 %v345
        %563 = vmatpush.msra.mxu0 %v342
        %564 = vmatpush.msra.mxu0 %v339
        %565 = vmatpush.msra.mxu0 %v336
        %566 = vmatpush.msra.mxu0 %v333
        %567 = vmatpush.msra.mxu0 %v330
        %568 = vmatpush.msra.mxu0 %v327
        %569 = vmatmul.f32.gmra.mxu0 %v530
        %v570 = vpop.f32.mrf.mxu0
        %v571 = vadd.f32 0.0, %v570
        %572 = vmatmul.f32.gmra.mxu0 %v533
        %v573 = vpop.f32.mrf.mxu0
        %v574 = vadd.f32 0.0, %v573
        %575 = vmatmul.f32.gmra.mxu0 %v536
        %v576 = vpop.f32.mrf.mxu0
        %v577 = vadd.f32 0.0, %v576
        %578 = vmatmul.f32.gmra.mxu0 %v539
        %v579 = vpop.f32.mrf.mxu0
        %v580 = vadd.f32 0.0, %v579
        %581 = vmatmul.f32.gmra.mxu0 %v542
        %v582 = vpop.f32.mrf.mxu0
        %v583 = vadd.f32 0.0, %v582
        %584 = vmatmul.f32.gmra.mxu0 %v545
        %v585 = vpop.f32.mrf.mxu0
        %v586 = vadd.f32 0.0, %v585
        %587 = vmatmul.f32.gmra.mxu0 %v548
        %v588 = vpop.f32.mrf.mxu0
        %v589 = vadd.f32 0.0, %v588
        %590 = vmatmul.f32.gmra.mxu0 %v551
        %v591 = vpop.f32.mrf.mxu0
        %v592 = vadd.f32 0.0, %v591
        %593 = vdwg.mxu0
        %v594 = vrcp.pop %v507
        %v595 = vmul.f32 %v507, %v594
        %v596 = vsub.f32 1.0, %v595
        %v597 = vmul.f32 %v594, %v596
        %v598 = vadd.f32 %v594, %v597
        %vm599 = vweird.f32 %v507
        %vm600 = vweird.f32 %v594
        %vm601 = vmor %vm599, %vm600
        %v602 = vsel %vm601, %v594, %v598
        %v603 = vand.u32 2147483647, %v507
        %vm604 = vcmp.eq.f32.partialorder %v603, 8.507059e+37
        %v605 = vand.u32 %v507, 2147483648
        %v606 = vor.u32 1.1754944e-38, %v605
        %v607 = vsel %vm604, %v606, %v602
        %v608 = vrcp.pop %v510
        %v609 = vmul.f32 %v510, %v608
        %v610 = vsub.f32 1.0, %v609
        %v611 = vmul.f32 %v608, %v610
        %v612 = vadd.f32 %v608, %v611
        %vm613 = vweird.f32 %v510
        %vm614 = vweird.f32 %v608
        %vm615 = vmor %vm613, %vm614
        %v616 = vsel %vm615, %v608, %v612
        %v617 = vand.u32 2147483647, %v510
        %vm618 = vcmp.eq.f32.partialorder %v617, 8.507059e+37
        %v619 = vand.u32 %v510, 2147483648
        %v620 = vor.u32 1.1754944e-38, %v619
        %v621 = vsel %vm618, %v620, %v616
        %v622 = vrcp.pop %v513
        %v623 = vmul.f32 %v513, %v622
        %v624 = vsub.f32 1.0, %v623
        %v625 = vmul.f32 %v622, %v624
        %v626 = vadd.f32 %v622, %v625
        %vm627 = vweird.f32 %v513
        %vm628 = vweird.f32 %v622
        %vm629 = vmor %vm627, %vm628
        %v630 = vsel %vm629, %v622, %v626
        %v631 = vand.u32 2147483647, %v513
        %vm632 = vcmp.eq.f32.partialorder %v631, 8.507059e+37
        %v633 = vand.u32 %v513, 2147483648
        %v634 = vor.u32 1.1754944e-38, %v633
        %v635 = vsel %vm632, %v634, %v630
        %v636 = vrcp.pop %v516
        %v637 = vmul.f32 %v516, %v636
        %v638 = vsub.f32 1.0, %v637
        %v639 = vmul.f32 %v636, %v638
        %v640 = vadd.f32 %v636, %v639
        %vm641 = vweird.f32 %v516
        %vm642 = vweird.f32 %v636
        %vm643 = vmor %vm641, %vm642
        %v644 = vsel %vm643, %v636, %v640
        %v645 = vand.u32 2147483647, %v516
        %vm646 = vcmp.eq.f32.partialorder %v645, 8.507059e+37
        %v647 = vand.u32 %v516, 2147483648
        %v648 = vor.u32 1.1754944e-38, %v647
        %v649 = vsel %vm646, %v648, %v644
        %v650 = vrcp.pop %v519
        %v651 = vmul.f32 %v519, %v650
        %v652 = vsub.f32 1.0, %v651
        %v653 = vmul.f32 %v650, %v652
        %v654 = vadd.f32 %v650, %v653
        %vm655 = vweird.f32 %v519
        %vm656 = vweird.f32 %v650
        %vm657 = vmor %vm655, %vm656
        %v658 = vsel %vm657, %v650, %v654
        %v659 = vand.u32 2147483647, %v519
        %vm660 = vcmp.eq.f32.partialorder %v659, 8.507059e+37
        %v661 = vand.u32 %v519, 2147483648
        %v662 = vor.u32 1.1754944e-38, %v661
        %v663 = vsel %vm660, %v662, %v658
        %v664 = vrcp.pop %v522
        %v665 = vmul.f32 %v522, %v664
        %v666 = vsub.f32 1.0, %v665
        %v667 = vmul.f32 %v664, %v666
        %v668 = vadd.f32 %v664, %v667
        %vm669 = vweird.f32 %v522
        %vm670 = vweird.f32 %v664
        %vm671 = vmor %vm669, %vm670
        %v672 = vsel %vm671, %v664, %v668
        %v673 = vand.u32 2147483647, %v522
        %vm674 = vcmp.eq.f32.partialorder %v673, 8.507059e+37
        %v675 = vand.u32 %v522, 2147483648
        %v676 = vor.u32 1.1754944e-38, %v675
        %v677 = vsel %vm674, %v676, %v672
        %v678 = vrcp.pop %v525
        %v679 = vmul.f32 %v525, %v678
        %v680 = vsub.f32 1.0, %v679
        %v681 = vmul.f32 %v678, %v680
        %v682 = vadd.f32 %v678, %v681
        %vm683 = vweird.f32 %v525
        %vm684 = vweird.f32 %v678
        %vm685 = vmor %vm683, %vm684
        %v686 = vsel %vm685, %v678, %v682
        %v687 = vand.u32 2147483647, %v525
        %vm688 = vcmp.eq.f32.partialorder %v687, 8.507059e+37
        %v689 = vand.u32 %v525, 2147483648
        %v690 = vor.u32 1.1754944e-38, %v689
        %v691 = vsel %vm688, %v690, %v686
        %v692 = vrcp.pop %v528
        %v693 = vmul.f32 %v528, %v692
        %v694 = vsub.f32 1.0, %v693
        %v695 = vmul.f32 %v692, %v694
        %v696 = vadd.f32 %v692, %v695
        %vm697 = vweird.f32 %v528
        %vm698 = vweird.f32 %v692
        %vm699 = vmor %vm697, %vm698
        %v700 = vsel %vm699, %v692, %v696
        %v701 = vand.u32 2147483647, %v528
        %vm702 = vcmp.eq.f32.partialorder %v701, 8.507059e+37
        %v703 = vand.u32 %v528, 2147483648
        %v704 = vor.u32 1.1754944e-38, %v703
        %v705 = vsel %vm702, %v704, %v700
        %v706 = vmul.f32 %v571, %v607
        %v707 = vmul.f32 %v574, %v621
        %v708 = vmul.f32 %v577, %v635
        %v709 = vmul.f32 %v580, %v649
        %v710 = vmul.f32 %v583, %v663
        %v711 = vmul.f32 %v586, %v677
        %v712 = vmul.f32 %v589, %v691
        %v713 = vmul.f32 %v592, %v705
        %722 = vrot.lane.b32.xlu0 %v179, 32
        %v723 = vpop.permute.xlu0 %722
        %724 = vrot.lane.b32.xlu0 %v180, 32
        %v725 = vpop.permute.xlu0 %724
        %726 = vrot.lane.b32.xlu0 %v181, 32
        %v727 = vpop.permute.xlu0 %726
        %728 = vrot.lane.b32.xlu0 %v182, 32
        %v729 = vpop.permute.xlu0 %728
        %730 = vrot.lane.b32.xlu0 %v183, 32
        %v731 = vpop.permute.xlu0 %730
        %732 = vrot.lane.b32.xlu0 %v184, 32
        %v733 = vpop.permute.xlu0 %732
        %734 = vrot.lane.b32.xlu0 %v185, 32
        %v735 = vpop.permute.xlu0 %734
        %736 = vrot.lane.b32.xlu0 %v186, 32
        %v737 = vpop.permute.xlu0 %736
        %v746 = vadd.f32 %v286, %v723
        %v747 = vadd.f32 %v289, %v725
        %v748 = vadd.f32 %v292, %v727
        %v749 = vadd.f32 %v295, %v729
        %v750 = vadd.f32 %v298, %v731
        %v751 = vadd.f32 %v301, %v733
        %v752 = vadd.f32 %v304, %v735
        %v753 = vadd.f32 %v307, %v737
        %754 = vrot.lane.b32.xlu0 %v350, 96
        %v755 = vpop.permute.xlu0 %754
        %756 = vrot.lane.b32.xlu0 %v351, 96
        %v757 = vpop.permute.xlu0 %756
        %758 = vrot.lane.b32.xlu0 %v352, 96
        %v759 = vpop.permute.xlu0 %758
        %760 = vrot.lane.b32.xlu0 %v353, 96
        %v761 = vpop.permute.xlu0 %760
        %762 = vrot.lane.b32.xlu0 %v354, 96
        %v763 = vpop.permute.xlu0 %762
        %764 = vrot.lane.b32.xlu0 %v355, 96
        %v765 = vpop.permute.xlu0 %764
        %766 = vrot.lane.b32.xlu0 %v356, 96
        %v767 = vpop.permute.xlu0 %766
        %768 = vrot.lane.b32.xlu0 %v357, 96
        %v769 = vpop.permute.xlu0 %768
        %778 = vrot.lane.b32.xlu0 %v746, 96
        %v779 = vpop.permute.xlu0 %778
        %780 = vrot.lane.b32.xlu0 %v747, 96
        %v781 = vpop.permute.xlu0 %780
        %782 = vrot.lane.b32.xlu0 %v748, 96
        %v783 = vpop.permute.xlu0 %782
        %784 = vrot.lane.b32.xlu0 %v749, 96
        %v785 = vpop.permute.xlu0 %784
        %786 = vrot.lane.b32.xlu0 %v750, 96
        %v787 = vpop.permute.xlu0 %786
        %788 = vrot.lane.b32.xlu0 %v751, 96
        %v789 = vpop.permute.xlu0 %788
        %790 = vrot.lane.b32.xlu0 %v752, 96
        %v791 = vpop.permute.xlu0 %790
        %792 = vrot.lane.b32.xlu0 %v753, 96
        %v793 = vpop.permute.xlu0 %792
        %v794 = vsel %vm366, %v755, 0
        %v796 = vsel %vm366, %v757, 0
        %v798 = vsel %vm366, %v759, 0
        %v800 = vsel %vm366, %v761, 0
        %v802 = vsel %vm366, %v763, 0
        %v804 = vsel %vm366, %v765, 0
        %v806 = vsel %vm366, %v767, 0
        %v808 = vsel %vm366, %v769, 0
        %v810 = vsel %vm366, %v779, 0
        %v812 = vsel %vm366, %v781, 0
        %v814 = vsel %vm366, %v783, 0
        %v816 = vsel %vm366, %v785, 0
        %v818 = vsel %vm366, %v787, 0
        %v820 = vsel %vm366, %v789, 0
        %v822 = vsel %vm366, %v791, 0
        %v824 = vsel %vm366, %v793, 0
        %826 = vmatpush.xpose.msra.mxu0 0.0
        %827 = vmatpush.xpose.msra.mxu0 0.0
        %828 = vmatpush.xpose.msra.mxu0 0.0
        %829 = vmatpush.xpose.msra.mxu0 0.0
        %830 = vmatpush.xpose.msra.mxu0 0.0
        %831 = vmatpush.xpose.msra.mxu0 0.0
        %832 = vmatpush.xpose.msra.mxu0 0.0
        %833 = vmatpush.xpose.msra.mxu0 0.0
        %834 = vmatpush.xpose.msra.mxu0 %v824
        %835 = vmatpush.xpose.msra.mxu0 %v822
        %836 = vmatpush.xpose.msra.mxu0 %v820
        %837 = vmatpush.xpose.msra.mxu0 %v818
        %838 = vmatpush.xpose.msra.mxu0 %v816
        %839 = vmatpush.xpose.msra.mxu0 %v814
        %840 = vmatpush.xpose.msra.mxu0 %v812
        %841 = vmatpush.xpose.msra.mxu0 %v810
        %842 = vmatmul.f32.gmra.mxu0 %v794
        %v843 = vpop.f32.mrf.mxu0
        %v844 = vadd.f32 0.0, %v843
        %845 = vmatmul.f32.gmra.mxu0 %v796
        %v846 = vpop.f32.mrf.mxu0
        %v847 = vadd.f32 0.0, %v846
        %848 = vmatmul.f32.gmra.mxu0 %v798
        %v849 = vpop.f32.mrf.mxu0
        %v850 = vadd.f32 0.0, %v849
        %851 = vmatmul.f32.gmra.mxu0 %v800
        %v852 = vpop.f32.mrf.mxu0
        %v853 = vadd.f32 0.0, %v852
        %854 = vmatmul.f32.gmra.mxu0 %v802
        %v855 = vpop.f32.mrf.mxu0
        %v856 = vadd.f32 0.0, %v855
        %857 = vmatmul.f32.gmra.mxu0 %v804
        %v858 = vpop.f32.mrf.mxu0
        %v859 = vadd.f32 0.0, %v858
        %860 = vmatmul.f32.gmra.mxu0 %v806
        %v861 = vpop.f32.mrf.mxu0
        %v862 = vadd.f32 0.0, %v861
        %863 = vmatmul.f32.gmra.mxu0 %v808
        %v864 = vpop.f32.mrf.mxu0
        %v865 = vadd.f32 0.0, %v864
        %866 = vdwg.mxu0
        %v867 = vsel %vm456, %v844, -inf
        %868 = vmax.xlane.f32.xlu0 %v867
        %v869 = vpop.xlane.xlu0 %868
        %v870 = vsel %vm456, %v847, -inf
        %871 = vmax.xlane.f32.xlu0 %v870
        %v872 = vpop.xlane.xlu0 %871
        %v873 = vsel %vm456, %v850, -inf
        %874 = vmax.xlane.f32.xlu0 %v873
        %v875 = vpop.xlane.xlu0 %874
        %v876 = vsel %vm456, %v853, -inf
        %877 = vmax.xlane.f32.xlu0 %v876
        %v878 = vpop.xlane.xlu0 %877
        %v879 = vsel %vm456, %v856, -inf
        %880 = vmax.xlane.f32.xlu0 %v879
        %v881 = vpop.xlane.xlu0 %880
        %v882 = vsel %vm456, %v859, -inf
        %883 = vmax.xlane.f32.xlu0 %v882
        %v884 = vpop.xlane.xlu0 %883
        %v885 = vsel %vm456, %v862, -inf
        %886 = vmax.xlane.f32.xlu0 %v885
        %v887 = vpop.xlane.xlu0 %886
        %v888 = vsel %vm456, %v865, -inf
        %889 = vmax.xlane.f32.xlu0 %v888
        %v890 = vpop.xlane.xlu0 %889
        %v891 = vsub.f32 %v844, %v869
        %v892 = vsub.f32 %v847, %v872
        %v893 = vsub.f32 %v850, %v875
        %v894 = vsub.f32 %v853, %v878
        %v895 = vsub.f32 %v856, %v881
        %v896 = vsub.f32 %v859, %v884
        %v897 = vsub.f32 %v862, %v887
        %v898 = vsub.f32 %v865, %v890
        %v899 = vmul.f32 %v891, 1.442695
        %v900 = vpow.pop %v899
        %v901 = vmul.f32 %v892, 1.442695
        %v902 = vpow.pop %v901
        %v903 = vmul.f32 %v893, 1.442695
        %v904 = vpow.pop %v903
        %v905 = vmul.f32 %v894, 1.442695
        %v906 = vpow.pop %v905
        %v907 = vmul.f32 %v895, 1.442695
        %v908 = vpow.pop %v907
        %v909 = vmul.f32 %v896, 1.442695
        %v910 = vpow.pop %v909
        %v911 = vmul.f32 %v897, 1.442695
        %v912 = vpow.pop %v911
        %v913 = vmul.f32 %v898, 1.442695
        %v914 = vpow.pop %v913
        %v915 = vsel %vm456, %v900, 0.0
        %916 = vadd.xlane.f32.xlu0 %v915
        %v917 = vpop.xlane.xlu0 %916
        %v918 = vsel %vm456, %v902, 0.0
        %919 = vadd.xlane.f32.xlu0 %v918
        %v920 = vpop.xlane.xlu0 %919
        %v921 = vsel %vm456, %v904, 0.0
        %922 = vadd.xlane.f32.xlu0 %v921
        %v923 = vpop.xlane.xlu0 %922
        %v924 = vsel %vm456, %v906, 0.0
        %925 = vadd.xlane.f32.xlu0 %v924
        %v926 = vpop.xlane.xlu0 %925
        %v927 = vsel %vm456, %v908, 0.0
        %928 = vadd.xlane.f32.xlu0 %v927
        %v929 = vpop.xlane.xlu0 %928
        %v930 = vsel %vm456, %v910, 0.0
        %931 = vadd.xlane.f32.xlu0 %v930
        %v932 = vpop.xlane.xlu0 %931
        %v933 = vsel %vm456, %v912, 0.0
        %934 = vadd.xlane.f32.xlu0 %v933
        %v935 = vpop.xlane.xlu0 %934
        %v936 = vsel %vm456, %v914, 0.0
        %937 = vadd.xlane.f32.xlu0 %v936
        %v938 = vpop.xlane.xlu0 %937
        %947 = vrot.lane.b32.xlu0 %v327, 96
        %v948 = vpop.permute.xlu0 %947
        %949 = vrot.lane.b32.xlu0 %v330, 96
        %v950 = vpop.permute.xlu0 %949
        %951 = vrot.lane.b32.xlu0 %v333, 96
        %v952 = vpop.permute.xlu0 %951
        %953 = vrot.lane.b32.xlu0 %v336, 96
        %v954 = vpop.permute.xlu0 %953
        %955 = vrot.lane.b32.xlu0 %v339, 96
        %v956 = vpop.permute.xlu0 %955
        %957 = vrot.lane.b32.xlu0 %v342, 96
        %v958 = vpop.permute.xlu0 %957
        %959 = vrot.lane.b32.xlu0 %v345, 96
        %v960 = vpop.permute.xlu0 %959
        %961 = vrot.lane.b32.xlu0 %v348, 96
        %v962 = vpop.permute.xlu0 %961
        %v972 = vsel %vm456, %v900, 0
        %v975 = vsel %vm456, %v902, 0
        %v978 = vsel %vm456, %v904, 0
        %v981 = vsel %vm456, %v906, 0
        %v984 = vsel %vm456, %v908, 0
        %v987 = vsel %vm456, %v910, 0
        %v990 = vsel %vm456, %v912, 0
        %v993 = vsel %vm456, %v914, 0
        %995 = vmatpush.msra.mxu0 0.0
        %996 = vmatpush.msra.mxu0 0.0
        %997 = vmatpush.msra.mxu0 0.0
        %998 = vmatpush.msra.mxu0 0.0
        %999 = vmatpush.msra.mxu0 0.0
        %1000 = vmatpush.msra.mxu0 0.0
        %1001 = vmatpush.msra.mxu0 0.0
        %1002 = vmatpush.msra.mxu0 0.0
        %1003 = vmatpush.msra.mxu0 %v962
        %1004 = vmatpush.msra.mxu0 %v960
        %1005 = vmatpush.msra.mxu0 %v958
        %1006 = vmatpush.msra.mxu0 %v956
        %1007 = vmatpush.msra.mxu0 %v954
        %1008 = vmatpush.msra.mxu0 %v952
        %1009 = vmatpush.msra.mxu0 %v950
        %1010 = vmatpush.msra.mxu0 %v948
        %1011 = vmatmul.f32.gmra.mxu0 %v972
        %v1012 = vpop.f32.mrf.mxu0
        %v1013 = vadd.f32 0.0, %v1012
        %1014 = vmatmul.f32.gmra.mxu0 %v975
        %v1015 = vpop.f32.mrf.mxu0
        %v1016 = vadd.f32 0.0, %v1015
        %1017 = vmatmul.f32.gmra.mxu0 %v978
        %v1018 = vpop.f32.mrf.mxu0
        %v1019 = vadd.f32 0.0, %v1018
        %1020 = vmatmul.f32.gmra.mxu0 %v981
        %v1021 = vpop.f32.mrf.mxu0
        %v1022 = vadd.f32 0.0, %v1021
        %1023 = vmatmul.f32.gmra.mxu0 %v984
        %v1024 = vpop.f32.mrf.mxu0
        %v1025 = vadd.f32 0.0, %v1024
        %1026 = vmatmul.f32.gmra.mxu0 %v987
        %v1027 = vpop.f32.mrf.mxu0
        %v1028 = vadd.f32 0.0, %v1027
        %1029 = vmatmul.f32.gmra.mxu0 %v990
        %v1030 = vpop.f32.mrf.mxu0
        %v1031 = vadd.f32 0.0, %v1030
        %1032 = vmatmul.f32.gmra.mxu0 %v993
        %v1033 = vpop.f32.mrf.mxu0
        %v1034 = vadd.f32 0.0, %v1033
        %1035 = vdwg.mxu0
        %v1036 = vrcp.pop %v917
        %v1037 = vmul.f32 %v917, %v1036
        %v1038 = vsub.f32 1.0, %v1037
        %v1039 = vmul.f32 %v1036, %v1038
        %v1040 = vadd.f32 %v1036, %v1039
        %vm1041 = vweird.f32 %v917
        %vm1042 = vweird.f32 %v1036
        %vm1043 = vmor %vm1041, %vm1042
        %v1044 = vsel %vm1043, %v1036, %v1040
        %v1045 = vand.u32 2147483647, %v917
        %vm1046 = vcmp.eq.f32.partialorder %v1045, 8.507059e+37
        %v1047 = vand.u32 %v917, 2147483648
        %v1048 = vor.u32 1.1754944e-38, %v1047
        %v1049 = vsel %vm1046, %v1048, %v1044
        %v1050 = vrcp.pop %v920
        %v1051 = vmul.f32 %v920, %v1050
        %v1052 = vsub.f32 1.0, %v1051
        %v1053 = vmul.f32 %v1050, %v1052
        %v1054 = vadd.f32 %v1050, %v1053
        %vm1055 = vweird.f32 %v920
        %vm1056 = vweird.f32 %v1050
        %vm1057 = vmor %vm1055, %vm1056
        %v1058 = vsel %vm1057, %v1050, %v1054
        %v1059 = vand.u32 2147483647, %v920
        %vm1060 = vcmp.eq.f32.partialorder %v1059, 8.507059e+37
        %v1061 = vand.u32 %v920, 2147483648
        %v1062 = vor.u32 1.1754944e-38, %v1061
        %v1063 = vsel %vm1060, %v1062, %v1058
        %v1064 = vrcp.pop %v923
        %v1065 = vmul.f32 %v923, %v1064
        %v1066 = vsub.f32 1.0, %v1065
        %v1067 = vmul.f32 %v1064, %v1066
        %v1068 = vadd.f32 %v1064, %v1067
        %vm1069 = vweird.f32 %v923
        %vm1070 = vweird.f32 %v1064
        %vm1071 = vmor %vm1069, %vm1070
        %v1072 = vsel %vm1071, %v1064, %v1068
        %v1073 = vand.u32 2147483647, %v923
        %vm1074 = vcmp.eq.f32.partialorder %v1073, 8.507059e+37
        %v1075 = vand.u32 %v923, 2147483648
        %v1076 = vor.u32 1.1754944e-38, %v1075
        %v1077 = vsel %vm1074, %v1076, %v1072
        %v1078 = vrcp.pop %v926
        %v1079 = vmul.f32 %v926, %v1078
        %v1080 = vsub.f32 1.0, %v1079
        %v1081 = vmul.f32 %v1078, %v1080
        %v1082 = vadd.f32 %v1078, %v1081
        %vm1083 = vweird.f32 %v926
        %vm1084 = vweird.f32 %v1078
        %vm1085 = vmor %vm1083, %vm1084
        %v1086 = vsel %vm1085, %v1078, %v1082
        %v1087 = vand.u32 2147483647, %v926
        %vm1088 = vcmp.eq.f32.partialorder %v1087, 8.507059e+37
        %v1089 = vand.u32 %v926, 2147483648
        %v1090 = vor.u32 1.1754944e-38, %v1089
        %v1091 = vsel %vm1088, %v1090, %v1086
        %v1092 = vrcp.pop %v929
        %v1093 = vmul.f32 %v929, %v1092
        %v1094 = vsub.f32 1.0, %v1093
        %v1095 = vmul.f32 %v1092, %v1094
        %v1096 = vadd.f32 %v1092, %v1095
        %vm1097 = vweird.f32 %v929
        %vm1098 = vweird.f32 %v1092
        %vm1099 = vmor %vm1097, %vm1098
        %v1100 = vsel %vm1099, %v1092, %v1096
        %v1101 = vand.u32 2147483647, %v929
        %vm1102 = vcmp.eq.f32.partialorder %v1101, 8.507059e+37
        %v1103 = vand.u32 %v929, 2147483648
        %v1104 = vor.u32 1.1754944e-38, %v1103
        %v1105 = vsel %vm1102, %v1104, %v1100
        %v1106 = vrcp.pop %v932
        %v1107 = vmul.f32 %v932, %v1106
        %v1108 = vsub.f32 1.0, %v1107
        %v1109 = vmul.f32 %v1106, %v1108
        %v1110 = vadd.f32 %v1106, %v1109
        %vm1111 = vweird.f32 %v932
        %vm1112 = vweird.f32 %v1106
        %vm1113 = vmor %vm1111, %vm1112
        %v1114 = vsel %vm1113, %v1106, %v1110
        %v1115 = vand.u32 2147483647, %v932
        %vm1116 = vcmp.eq.f32.partialorder %v1115, 8.507059e+37
        %v1117 = vand.u32 %v932, 2147483648
        %v1118 = vor.u32 1.1754944e-38, %v1117
        %v1119 = vsel %vm1116, %v1118, %v1114
        %v1120 = vrcp.pop %v935
        %v1121 = vmul.f32 %v935, %v1120
        %v1122 = vsub.f32 1.0, %v1121
        %v1123 = vmul.f32 %v1120, %v1122
        %v1124 = vadd.f32 %v1120, %v1123
        %vm1125 = vweird.f32 %v935
        %vm1126 = vweird.f32 %v1120
        %vm1127 = vmor %vm1125, %vm1126
        %v1128 = vsel %vm1127, %v1120, %v1124
        %v1129 = vand.u32 2147483647, %v935
        %vm1130 = vcmp.eq.f32.partialorder %v1129, 8.507059e+37
        %v1131 = vand.u32 %v935, 2147483648
        %v1132 = vor.u32 1.1754944e-38, %v1131
        %v1133 = vsel %vm1130, %v1132, %v1128
        %v1134 = vrcp.pop %v938
        %v1135 = vmul.f32 %v938, %v1134
        %v1136 = vsub.f32 1.0, %v1135
        %v1137 = vmul.f32 %v1134, %v1136
        %v1138 = vadd.f32 %v1134, %v1137
        %vm1139 = vweird.f32 %v938
        %vm1140 = vweird.f32 %v1134
        %vm1141 = vmor %vm1139, %vm1140
        %v1142 = vsel %vm1141, %v1134, %v1138
        %v1143 = vand.u32 2147483647, %v938
        %vm1144 = vcmp.eq.f32.partialorder %v1143, 8.507059e+37
        %v1145 = vand.u32 %v938, 2147483648
        %v1146 = vor.u32 1.1754944e-38, %v1145
        %v1147 = vsel %vm1144, %v1146, %v1142
        %v1148 = vmul.f32 %v1013, %v1049
        %v1149 = vmul.f32 %v1016, %v1063
        %v1150 = vmul.f32 %v1019, %v1077
        %v1151 = vmul.f32 %v1022, %v1091
        %v1152 = vmul.f32 %v1025, %v1105
        %v1153 = vmul.f32 %v1028, %v1119
        %v1154 = vmul.f32 %v1031, %v1133
        %v1155 = vmul.f32 %v1034, %v1147
        %1156 = vrot.lane.b32.xlu0 %v179, 64
        %v1157 = vpop.permute.xlu0 %1156
        %1158 = vrot.lane.b32.xlu0 %v180, 64
        %v1159 = vpop.permute.xlu0 %1158
        %1160 = vrot.lane.b32.xlu0 %v181, 64
        %v1161 = vpop.permute.xlu0 %1160
        %1162 = vrot.lane.b32.xlu0 %v182, 64
        %v1163 = vpop.permute.xlu0 %1162
        %1164 = vrot.lane.b32.xlu0 %v183, 64
        %v1165 = vpop.permute.xlu0 %1164
        %1166 = vrot.lane.b32.xlu0 %v184, 64
        %v1167 = vpop.permute.xlu0 %1166
        %1168 = vrot.lane.b32.xlu0 %v185, 64
        %v1169 = vpop.permute.xlu0 %1168
        %1170 = vrot.lane.b32.xlu0 %v186, 64
        %v1171 = vpop.permute.xlu0 %1170
        %v1180 = vadd.f32 %v286, %v1157
        %v1181 = vadd.f32 %v289, %v1159
        %v1182 = vadd.f32 %v292, %v1161
        %v1183 = vadd.f32 %v295, %v1163
        %v1184 = vadd.f32 %v298, %v1165
        %v1185 = vadd.f32 %v301, %v1167
        %v1186 = vadd.f32 %v304, %v1169
        %v1187 = vadd.f32 %v307, %v1171
        %1188 = vrot.lane.b32.xlu0 %v350, 64
        %v1189 = vpop.permute.xlu0 %1188
        %1190 = vrot.lane.b32.xlu0 %v351, 64
        %v1191 = vpop.permute.xlu0 %1190
        %1192 = vrot.lane.b32.xlu0 %v352, 64
        %v1193 = vpop.permute.xlu0 %1192
        %1194 = vrot.lane.b32.xlu0 %v353, 64
        %v1195 = vpop.permute.xlu0 %1194
        %1196 = vrot.lane.b32.xlu0 %v354, 64
        %v1197 = vpop.permute.xlu0 %1196
        %1198 = vrot.lane.b32.xlu0 %v355, 64
        %v1199 = vpop.permute.xlu0 %1198
        %1200 = vrot.lane.b32.xlu0 %v356, 64
        %v1201 = vpop.permute.xlu0 %1200
        %1202 = vrot.lane.b32.xlu0 %v357, 64
        %v1203 = vpop.permute.xlu0 %1202
        %1212 = vrot.lane.b32.xlu0 %v1180, 64
        %v1213 = vpop.permute.xlu0 %1212
        %1214 = vrot.lane.b32.xlu0 %v1181, 64
        %v1215 = vpop.permute.xlu0 %1214
        %1216 = vrot.lane.b32.xlu0 %v1182, 64
        %v1217 = vpop.permute.xlu0 %1216
        %1218 = vrot.lane.b32.xlu0 %v1183, 64
        %v1219 = vpop.permute.xlu0 %1218
        %1220 = vrot.lane.b32.xlu0 %v1184, 64
        %v1221 = vpop.permute.xlu0 %1220
        %1222 = vrot.lane.b32.xlu0 %v1185, 64
        %v1223 = vpop.permute.xlu0 %1222
        %1224 = vrot.lane.b32.xlu0 %v1186, 64
        %v1225 = vpop.permute.xlu0 %1224
        %1226 = vrot.lane.b32.xlu0 %v1187, 64
        %v1227 = vpop.permute.xlu0 %1226
        %v1228 = vsel %vm366, %v1189, 0
        %v1230 = vsel %vm366, %v1191, 0
        %v1232 = vsel %vm366, %v1193, 0
        %v1234 = vsel %vm366, %v1195, 0
        %v1236 = vsel %vm366, %v1197, 0
        %v1238 = vsel %vm366, %v1199, 0
        %v1240 = vsel %vm366, %v1201, 0
        %v1242 = vsel %vm366, %v1203, 0
        %v1244 = vsel %vm366, %v1213, 0
        %v1246 = vsel %vm366, %v1215, 0
        %v1248 = vsel %vm366, %v1217, 0
        %v1250 = vsel %vm366, %v1219, 0
        %v1252 = vsel %vm366, %v1221, 0
        %v1254 = vsel %vm366, %v1223, 0
        %v1256 = vsel %vm366, %v1225, 0
        %v1258 = vsel %vm366, %v1227, 0
        %1260 = vmatpush.xpose.msra.mxu0 0.0
        %1261 = vmatpush.xpose.msra.mxu0 0.0
        %1262 = vmatpush.xpose.msra.mxu0 0.0
        %1263 = vmatpush.xpose.msra.mxu0 0.0
        %1264 = vmatpush.xpose.msra.mxu0 0.0
        %1265 = vmatpush.xpose.msra.mxu0 0.0
        %1266 = vmatpush.xpose.msra.mxu0 0.0
        %1267 = vmatpush.xpose.msra.mxu0 0.0
        %1268 = vmatpush.xpose.msra.mxu0 %v1258
        %1269 = vmatpush.xpose.msra.mxu0 %v1256
        %1270 = vmatpush.xpose.msra.mxu0 %v1254
        %1271 = vmatpush.xpose.msra.mxu0 %v1252
        %1272 = vmatpush.xpose.msra.mxu0 %v1250
        %1273 = vmatpush.xpose.msra.mxu0 %v1248
        %1274 = vmatpush.xpose.msra.mxu0 %v1246
        %1275 = vmatpush.xpose.msra.mxu0 %v1244
        %1276 = vmatmul.f32.gmra.mxu0 %v1228
        %v1277 = vpop.f32.mrf.mxu0
        %v1278 = vadd.f32 0.0, %v1277
        %1279 = vmatmul.f32.gmra.mxu0 %v1230
        %v1280 = vpop.f32.mrf.mxu0
        %v1281 = vadd.f32 0.0, %v1280
        %1282 = vmatmul.f32.gmra.mxu0 %v1232
        %v1283 = vpop.f32.mrf.mxu0
        %v1284 = vadd.f32 0.0, %v1283
        %1285 = vmatmul.f32.gmra.mxu0 %v1234
        %v1286 = vpop.f32.mrf.mxu0
        %v1287 = vadd.f32 0.0, %v1286
        %1288 = vmatmul.f32.gmra.mxu0 %v1236
        %v1289 = vpop.f32.mrf.mxu0
        %v1290 = vadd.f32 0.0, %v1289
        %1291 = vmatmul.f32.gmra.mxu0 %v1238
        %v1292 = vpop.f32.mrf.mxu0
        %v1293 = vadd.f32 0.0, %v1292
        %1294 = vmatmul.f32.gmra.mxu0 %v1240
        %v1295 = vpop.f32.mrf.mxu0
        %v1296 = vadd.f32 0.0, %v1295
        %1297 = vmatmul.f32.gmra.mxu0 %v1242
        %v1298 = vpop.f32.mrf.mxu0
        %v1299 = vadd.f32 0.0, %v1298
        %1300 = vdwg.mxu0
        %v1301 = vsel %vm456, %v1278, -inf
        %1302 = vmax.xlane.f32.xlu0 %v1301
        %v1303 = vpop.xlane.xlu0 %1302
        %v1304 = vsel %vm456, %v1281, -inf
        %1305 = vmax.xlane.f32.xlu0 %v1304
        %v1306 = vpop.xlane.xlu0 %1305
        %v1307 = vsel %vm456, %v1284, -inf
        %1308 = vmax.xlane.f32.xlu0 %v1307
        %v1309 = vpop.xlane.xlu0 %1308
        %v1310 = vsel %vm456, %v1287, -inf
        %1311 = vmax.xlane.f32.xlu0 %v1310
        %v1312 = vpop.xlane.xlu0 %1311
        %v1313 = vsel %vm456, %v1290, -inf
        %1314 = vmax.xlane.f32.xlu0 %v1313
        %v1315 = vpop.xlane.xlu0 %1314
        %v1316 = vsel %vm456, %v1293, -inf
        %1317 = vmax.xlane.f32.xlu0 %v1316
        %v1318 = vpop.xlane.xlu0 %1317
        %v1319 = vsel %vm456, %v1296, -inf
        %1320 = vmax.xlane.f32.xlu0 %v1319
        %v1321 = vpop.xlane.xlu0 %1320
        %v1322 = vsel %vm456, %v1299, -inf
        %1323 = vmax.xlane.f32.xlu0 %v1322
        %v1324 = vpop.xlane.xlu0 %1323
        %v1325 = vsub.f32 %v1278, %v1303
        %v1326 = vsub.f32 %v1281, %v1306
        %v1327 = vsub.f32 %v1284, %v1309
        %v1328 = vsub.f32 %v1287, %v1312
        %v1329 = vsub.f32 %v1290, %v1315
        %v1330 = vsub.f32 %v1293, %v1318
        %v1331 = vsub.f32 %v1296, %v1321
        %v1332 = vsub.f32 %v1299, %v1324
        %v1333 = vmul.f32 %v1325, 1.442695
        %v1334 = vpow.pop %v1333
        %v1335 = vmul.f32 %v1326, 1.442695
        %v1336 = vpow.pop %v1335
        %v1337 = vmul.f32 %v1327, 1.442695
        %v1338 = vpow.pop %v1337
        %v1339 = vmul.f32 %v1328, 1.442695
        %v1340 = vpow.pop %v1339
        %v1341 = vmul.f32 %v1329, 1.442695
        %v1342 = vpow.pop %v1341
        %v1343 = vmul.f32 %v1330, 1.442695
        %v1344 = vpow.pop %v1343
        %v1345 = vmul.f32 %v1331, 1.442695
        %v1346 = vpow.pop %v1345
        %v1347 = vmul.f32 %v1332, 1.442695
        %v1348 = vpow.pop %v1347
        %v1349 = vsel %vm456, %v1334, 0.0
        %1350 = vadd.xlane.f32.xlu0 %v1349
        %v1351 = vpop.xlane.xlu0 %1350
        %v1352 = vsel %vm456, %v1336, 0.0
        %1353 = vadd.xlane.f32.xlu0 %v1352
        %v1354 = vpop.xlane.xlu0 %1353
        %v1355 = vsel %vm456, %v1338, 0.0
        %1356 = vadd.xlane.f32.xlu0 %v1355
        %v1357 = vpop.xlane.xlu0 %1356
        %v1358 = vsel %vm456, %v1340, 0.0
        %1359 = vadd.xlane.f32.xlu0 %v1358
        %v1360 = vpop.xlane.xlu0 %1359
        %v1361 = vsel %vm456, %v1342, 0.0
        %1362 = vadd.xlane.f32.xlu0 %v1361
        %v1363 = vpop.xlane.xlu0 %1362
        %v1364 = vsel %vm456, %v1344, 0.0
        %1365 = vadd.xlane.f32.xlu0 %v1364
        %v1366 = vpop.xlane.xlu0 %1365
        %v1367 = vsel %vm456, %v1346, 0.0
        %1368 = vadd.xlane.f32.xlu0 %v1367
        %v1369 = vpop.xlane.xlu0 %1368
        %v1370 = vsel %vm456, %v1348, 0.0
        %1371 = vadd.xlane.f32.xlu0 %v1370
        %v1372 = vpop.xlane.xlu0 %1371
        %1373 = vrot.lane.b32.xlu0 %v327, 64
        %v1374 = vpop.permute.xlu0 %1373
        %1375 = vrot.lane.b32.xlu0 %v330, 64
        %v1376 = vpop.permute.xlu0 %1375
        %1377 = vrot.lane.b32.xlu0 %v333, 64
        %v1378 = vpop.permute.xlu0 %1377
        %1379 = vrot.lane.b32.xlu0 %v336, 64
        %v1380 = vpop.permute.xlu0 %1379
        %1381 = vrot.lane.b32.xlu0 %v339, 64
        %v1382 = vpop.permute.xlu0 %1381
        %1383 = vrot.lane.b32.xlu0 %v342, 64
        %v1384 = vpop.permute.xlu0 %1383
        %1385 = vrot.lane.b32.xlu0 %v345, 64
        %v1386 = vpop.permute.xlu0 %1385
        %1387 = vrot.lane.b32.xlu0 %v348, 64
        %v1388 = vpop.permute.xlu0 %1387
        %v1398 = vsel %vm456, %v1334, 0
        %v1401 = vsel %vm456, %v1336, 0
        %v1404 = vsel %vm456, %v1338, 0
        %v1407 = vsel %vm456, %v1340, 0
        %v1410 = vsel %vm456, %v1342, 0
        %v1413 = vsel %vm456, %v1344, 0
        %v1416 = vsel %vm456, %v1346, 0
        %v1419 = vsel %vm456, %v1348, 0
        %1421 = vmatpush.msra.mxu0 0.0
        %1422 = vmatpush.msra.mxu0 0.0
        %1423 = vmatpush.msra.mxu0 0.0
        %1424 = vmatpush.msra.mxu0 0.0
        %1425 = vmatpush.msra.mxu0 0.0
        %1426 = vmatpush.msra.mxu0 0.0
        %1427 = vmatpush.msra.mxu0 0.0
        %1428 = vmatpush.msra.mxu0 0.0
        %1429 = vmatpush.msra.mxu0 %v1388
        %1430 = vmatpush.msra.mxu0 %v1386
        %1431 = vmatpush.msra.mxu0 %v1384
        %1432 = vmatpush.msra.mxu0 %v1382
        %1433 = vmatpush.msra.mxu0 %v1380
        %1434 = vmatpush.msra.mxu0 %v1378
        %1435 = vmatpush.msra.mxu0 %v1376
        %1436 = vmatpush.msra.mxu0 %v1374
        %1437 = vmatmul.f32.gmra.mxu0 %v1398
        %v1438 = vpop.f32.mrf.mxu0
        %v1439 = vadd.f32 0.0, %v1438
        %1440 = vmatmul.f32.gmra.mxu0 %v1401
        %v1441 = vpop.f32.mrf.mxu0
        %v1442 = vadd.f32 0.0, %v1441
        %1443 = vmatmul.f32.gmra.mxu0 %v1404
        %v1444 = vpop.f32.mrf.mxu0
        %v1445 = vadd.f32 0.0, %v1444
        %1446 = vmatmul.f32.gmra.mxu0 %v1407
        %v1447 = vpop.f32.mrf.mxu0
        %v1448 = vadd.f32 0.0, %v1447
        %1449 = vmatmul.f32.gmra.mxu0 %v1410
        %v1450 = vpop.f32.mrf.mxu0
        %v1451 = vadd.f32 0.0, %v1450
        %1452 = vmatmul.f32.gmra.mxu0 %v1413
        %v1453 = vpop.f32.mrf.mxu0
        %v1454 = vadd.f32 0.0, %v1453
        %1455 = vmatmul.f32.gmra.mxu0 %v1416
        %v1456 = vpop.f32.mrf.mxu0
        %v1457 = vadd.f32 0.0, %v1456
        %1458 = vmatmul.f32.gmra.mxu0 %v1419
        %v1459 = vpop.f32.mrf.mxu0
        %v1460 = vadd.f32 0.0, %v1459
        %1461 = vdwg.mxu0
        %v1462 = vrcp.pop %v1351
        %v1463 = vmul.f32 %v1351, %v1462
        %v1464 = vsub.f32 1.0, %v1463
        %v1465 = vmul.f32 %v1462, %v1464
        %v1466 = vadd.f32 %v1462, %v1465
        %vm1467 = vweird.f32 %v1351
        %vm1468 = vweird.f32 %v1462
        %vm1469 = vmor %vm1467, %vm1468
        %v1470 = vsel %vm1469, %v1462, %v1466
        %v1471 = vand.u32 2147483647, %v1351
        %vm1472 = vcmp.eq.f32.partialorder %v1471, 8.507059e+37
        %v1473 = vand.u32 %v1351, 2147483648
        %v1474 = vor.u32 1.1754944e-38, %v1473
        %v1475 = vsel %vm1472, %v1474, %v1470
        %v1476 = vrcp.pop %v1354
        %v1477 = vmul.f32 %v1354, %v1476
        %v1478 = vsub.f32 1.0, %v1477
        %v1479 = vmul.f32 %v1476, %v1478
        %v1480 = vadd.f32 %v1476, %v1479
        %vm1481 = vweird.f32 %v1354
        %vm1482 = vweird.f32 %v1476
        %vm1483 = vmor %vm1481, %vm1482
        %v1484 = vsel %vm1483, %v1476, %v1480
        %v1485 = vand.u32 2147483647, %v1354
        %vm1486 = vcmp.eq.f32.partialorder %v1485, 8.507059e+37
        %v1487 = vand.u32 %v1354, 2147483648
        %v1488 = vor.u32 1.1754944e-38, %v1487
        %v1489 = vsel %vm1486, %v1488, %v1484
        %v1490 = vrcp.pop %v1357
        %v1491 = vmul.f32 %v1357, %v1490
        %v1492 = vsub.f32 1.0, %v1491
        %v1493 = vmul.f32 %v1490, %v1492
        %v1494 = vadd.f32 %v1490, %v1493
        %vm1495 = vweird.f32 %v1357
        %vm1496 = vweird.f32 %v1490
        %vm1497 = vmor %vm1495, %vm1496
        %v1498 = vsel %vm1497, %v1490, %v1494
        %v1499 = vand.u32 2147483647, %v1357
        %vm1500 = vcmp.eq.f32.partialorder %v1499, 8.507059e+37
        %v1501 = vand.u32 %v1357, 2147483648
        %v1502 = vor.u32 1.1754944e-38, %v1501
        %v1503 = vsel %vm1500, %v1502, %v1498
        %v1504 = vrcp.pop %v1360
        %v1505 = vmul.f32 %v1360, %v1504
        %v1506 = vsub.f32 1.0, %v1505
        %v1507 = vmul.f32 %v1504, %v1506
        %v1508 = vadd.f32 %v1504, %v1507
        %vm1509 = vweird.f32 %v1360
        %vm1510 = vweird.f32 %v1504
        %vm1511 = vmor %vm1509, %vm1510
        %v1512 = vsel %vm1511, %v1504, %v1508
        %v1513 = vand.u32 2147483647, %v1360
        %vm1514 = vcmp.eq.f32.partialorder %v1513, 8.507059e+37
        %v1515 = vand.u32 %v1360, 2147483648
        %v1516 = vor.u32 1.1754944e-38, %v1515
        %v1517 = vsel %vm1514, %v1516, %v1512
        %v1518 = vrcp.pop %v1363
        %v1519 = vmul.f32 %v1363, %v1518
        %v1520 = vsub.f32 1.0, %v1519
        %v1521 = vmul.f32 %v1518, %v1520
        %v1522 = vadd.f32 %v1518, %v1521
        %vm1523 = vweird.f32 %v1363
        %vm1524 = vweird.f32 %v1518
        %vm1525 = vmor %vm1523, %vm1524
        %v1526 = vsel %vm1525, %v1518, %v1522
        %v1527 = vand.u32 2147483647, %v1363
        %vm1528 = vcmp.eq.f32.partialorder %v1527, 8.507059e+37
        %v1529 = vand.u32 %v1363, 2147483648
        %v1530 = vor.u32 1.1754944e-38, %v1529
        %v1531 = vsel %vm1528, %v1530, %v1526
        %v1532 = vrcp.pop %v1366
        %v1533 = vmul.f32 %v1366, %v1532
        %v1534 = vsub.f32 1.0, %v1533
        %v1535 = vmul.f32 %v1532, %v1534
        %v1536 = vadd.f32 %v1532, %v1535
        %vm1537 = vweird.f32 %v1366
        %vm1538 = vweird.f32 %v1532
        %vm1539 = vmor %vm1537, %vm1538
        %v1540 = vsel %vm1539, %v1532, %v1536
        %v1541 = vand.u32 2147483647, %v1366
        %vm1542 = vcmp.eq.f32.partialorder %v1541, 8.507059e+37
        %v1543 = vand.u32 %v1366, 2147483648
        %v1544 = vor.u32 1.1754944e-38, %v1543
        %v1545 = vsel %vm1542, %v1544, %v1540
        %v1546 = vrcp.pop %v1369
        %v1547 = vmul.f32 %v1369, %v1546
        %v1548 = vsub.f32 1.0, %v1547
        %v1549 = vmul.f32 %v1546, %v1548
        %v1550 = vadd.f32 %v1546, %v1549
        %vm1551 = vweird.f32 %v1369
        %vm1552 = vweird.f32 %v1546
        %vm1553 = vmor %vm1551, %vm1552
        %v1554 = vsel %vm1553, %v1546, %v1550
        %v1555 = vand.u32 2147483647, %v1369
        %vm1556 = vcmp.eq.f32.partialorder %v1555, 8.507059e+37
        %v1557 = vand.u32 %v1369, 2147483648
        %v1558 = vor.u32 1.1754944e-38, %v1557
        %v1559 = vsel %vm1556, %v1558, %v1554
        %v1560 = vrcp.pop %v1372
        %v1561 = vmul.f32 %v1372, %v1560
        %v1562 = vsub.f32 1.0, %v1561
        %v1563 = vmul.f32 %v1560, %v1562
        %v1564 = vadd.f32 %v1560, %v1563
        %vm1565 = vweird.f32 %v1372
        %vm1566 = vweird.f32 %v1560
        %vm1567 = vmor %vm1565, %vm1566
        %v1568 = vsel %vm1567, %v1560, %v1564
        %v1569 = vand.u32 2147483647, %v1372
        %vm1570 = vcmp.eq.f32.partialorder %v1569, 8.507059e+37
        %v1571 = vand.u32 %v1372, 2147483648
        %v1572 = vor.u32 1.1754944e-38, %v1571
        %v1573 = vsel %vm1570, %v1572, %v1568
        %v1574 = vmul.f32 %v1439, %v1475
        %v1575 = vmul.f32 %v1442, %v1489
        %v1576 = vmul.f32 %v1445, %v1503
        %v1577 = vmul.f32 %v1448, %v1517
        %v1578 = vmul.f32 %v1451, %v1531
        %v1579 = vmul.f32 %v1454, %v1545
        %v1580 = vmul.f32 %v1457, %v1559
        %v1581 = vmul.f32 %v1460, %v1573
        %1582 = vrot.lane.b32.xlu0 %v179, 96
        %v1583 = vpop.permute.xlu0 %1582
        %1584 = vrot.lane.b32.xlu0 %v180, 96
        %v1585 = vpop.permute.xlu0 %1584
        %1586 = vrot.lane.b32.xlu0 %v181, 96
        %v1587 = vpop.permute.xlu0 %1586
        %1588 = vrot.lane.b32.xlu0 %v182, 96
        %v1589 = vpop.permute.xlu0 %1588
        %1590 = vrot.lane.b32.xlu0 %v183, 96
        %v1591 = vpop.permute.xlu0 %1590
        %1592 = vrot.lane.b32.xlu0 %v184, 96
        %v1593 = vpop.permute.xlu0 %1592
        %1594 = vrot.lane.b32.xlu0 %v185, 96
        %v1595 = vpop.permute.xlu0 %1594
        %1596 = vrot.lane.b32.xlu0 %v186, 96
        %v1597 = vpop.permute.xlu0 %1596
        %v1606 = vadd.f32 %v286, %v1583
        %v1607 = vadd.f32 %v289, %v1585
        %v1608 = vadd.f32 %v292, %v1587
        %v1609 = vadd.f32 %v295, %v1589
        %v1610 = vadd.f32 %v298, %v1591
        %v1611 = vadd.f32 %v301, %v1593
        %v1612 = vadd.f32 %v304, %v1595
        %v1613 = vadd.f32 %v307, %v1597
        %1614 = vrot.lane.b32.xlu0 %v350, 32
        %v1615 = vpop.permute.xlu0 %1614
        %1616 = vrot.lane.b32.xlu0 %v351, 32
        %v1617 = vpop.permute.xlu0 %1616
        %1618 = vrot.lane.b32.xlu0 %v352, 32
        %v1619 = vpop.permute.xlu0 %1618
        %1620 = vrot.lane.b32.xlu0 %v353, 32
        %v1621 = vpop.permute.xlu0 %1620
        %1622 = vrot.lane.b32.xlu0 %v354, 32
        %v1623 = vpop.permute.xlu0 %1622
        %1624 = vrot.lane.b32.xlu0 %v355, 32
        %v1625 = vpop.permute.xlu0 %1624
        %1626 = vrot.lane.b32.xlu0 %v356, 32
        %v1627 = vpop.permute.xlu0 %1626
        %1628 = vrot.lane.b32.xlu0 %v357, 32
        %v1629 = vpop.permute.xlu0 %1628
        %1638 = vrot.lane.b32.xlu0 %v1606, 32
        %v1639 = vpop.permute.xlu0 %1638
        %1640 = vrot.lane.b32.xlu0 %v1607, 32
        %v1641 = vpop.permute.xlu0 %1640
        %1642 = vrot.lane.b32.xlu0 %v1608, 32
        %v1643 = vpop.permute.xlu0 %1642
        %1644 = vrot.lane.b32.xlu0 %v1609, 32
        %v1645 = vpop.permute.xlu0 %1644
        %1646 = vrot.lane.b32.xlu0 %v1610, 32
        %v1647 = vpop.permute.xlu0 %1646
        %1648 = vrot.lane.b32.xlu0 %v1611, 32
        %v1649 = vpop.permute.xlu0 %1648
        %1650 = vrot.lane.b32.xlu0 %v1612, 32
        %v1651 = vpop.permute.xlu0 %1650
        %1652 = vrot.lane.b32.xlu0 %v1613, 32
        %v1653 = vpop.permute.xlu0 %1652
        %v1654 = vsel %vm366, %v1615, 0
        %v1656 = vsel %vm366, %v1617, 0
        %v1658 = vsel %vm366, %v1619, 0
        %v1660 = vsel %vm366, %v1621, 0
        %v1662 = vsel %vm366, %v1623, 0
        %v1664 = vsel %vm366, %v1625, 0
        %v1666 = vsel %vm366, %v1627, 0
        %v1668 = vsel %vm366, %v1629, 0
        %v1670 = vsel %vm366, %v1639, 0
        %v1672 = vsel %vm366, %v1641, 0
        %v1674 = vsel %vm366, %v1643, 0
        %v1676 = vsel %vm366, %v1645, 0
        %v1678 = vsel %vm366, %v1647, 0
        %v1680 = vsel %vm366, %v1649, 0
        %v1682 = vsel %vm366, %v1651, 0
        %v1684 = vsel %vm366, %v1653, 0
        %1686 = vmatpush.xpose.msra.mxu0 0.0
        %1687 = vmatpush.xpose.msra.mxu0 0.0
        %1688 = vmatpush.xpose.msra.mxu0 0.0
        %1689 = vmatpush.xpose.msra.mxu0 0.0
        %1690 = vmatpush.xpose.msra.mxu0 0.0
        %1691 = vmatpush.xpose.msra.mxu0 0.0
        %1692 = vmatpush.xpose.msra.mxu0 0.0
        %1693 = vmatpush.xpose.msra.mxu0 0.0
        %1694 = vmatpush.xpose.msra.mxu0 %v1684
        %1695 = vmatpush.xpose.msra.mxu0 %v1682
        %1696 = vmatpush.xpose.msra.mxu0 %v1680
        %1697 = vmatpush.xpose.msra.mxu0 %v1678
        %1698 = vmatpush.xpose.msra.mxu0 %v1676
        %1699 = vmatpush.xpose.msra.mxu0 %v1674
        %1700 = vmatpush.xpose.msra.mxu0 %v1672
        %1701 = vmatpush.xpose.msra.mxu0 %v1670
        %1702 = vmatmul.f32.gmra.mxu0 %v1654
        %v1703 = vpop.f32.mrf.mxu0
        %v1704 = vadd.f32 0.0, %v1703
        %1705 = vmatmul.f32.gmra.mxu0 %v1656
        %v1706 = vpop.f32.mrf.mxu0
        %v1707 = vadd.f32 0.0, %v1706
        %1708 = vmatmul.f32.gmra.mxu0 %v1658
        %v1709 = vpop.f32.mrf.mxu0
        %v1710 = vadd.f32 0.0, %v1709
        %1711 = vmatmul.f32.gmra.mxu0 %v1660
        %v1712 = vpop.f32.mrf.mxu0
        %v1713 = vadd.f32 0.0, %v1712
        %1714 = vmatmul.f32.gmra.mxu0 %v1662
        %v1715 = vpop.f32.mrf.mxu0
        %v1716 = vadd.f32 0.0, %v1715
        %1717 = vmatmul.f32.gmra.mxu0 %v1664
        %v1718 = vpop.f32.mrf.mxu0
        %v1719 = vadd.f32 0.0, %v1718
        %1720 = vmatmul.f32.gmra.mxu0 %v1666
        %v1721 = vpop.f32.mrf.mxu0
        %v1722 = vadd.f32 0.0, %v1721
        %1723 = vmatmul.f32.gmra.mxu0 %v1668
        %v1724 = vpop.f32.mrf.mxu0
        %v1725 = vadd.f32 0.0, %v1724
        %1726 = vdwg.mxu0
        %v1727 = vsel %vm456, %v1704, -inf
        %1728 = vmax.xlane.f32.xlu0 %v1727
        %v1729 = vpop.xlane.xlu0 %1728
        %v1730 = vsel %vm456, %v1707, -inf
        %1731 = vmax.xlane.f32.xlu0 %v1730
        %v1732 = vpop.xlane.xlu0 %1731
        %v1733 = vsel %vm456, %v1710, -inf
        %1734 = vmax.xlane.f32.xlu0 %v1733
        %v1735 = vpop.xlane.xlu0 %1734
        %v1736 = vsel %vm456, %v1713, -inf
        %1737 = vmax.xlane.f32.xlu0 %v1736
        %v1738 = vpop.xlane.xlu0 %1737
        %v1739 = vsel %vm456, %v1716, -inf
        %1740 = vmax.xlane.f32.xlu0 %v1739
        %v1741 = vpop.xlane.xlu0 %1740
        %v1742 = vsel %vm456, %v1719, -inf
        %1743 = vmax.xlane.f32.xlu0 %v1742
        %v1744 = vpop.xlane.xlu0 %1743
        %v1745 = vsel %vm456, %v1722, -inf
        %1746 = vmax.xlane.f32.xlu0 %v1745
        %v1747 = vpop.xlane.xlu0 %1746
        %v1748 = vsel %vm456, %v1725, -inf
        %1749 = vmax.xlane.f32.xlu0 %v1748
        %v1750 = vpop.xlane.xlu0 %1749
        %v1751 = vsub.f32 %v1704, %v1729
        %v1752 = vsub.f32 %v1707, %v1732
        %v1753 = vsub.f32 %v1710, %v1735
        %v1754 = vsub.f32 %v1713, %v1738
        %v1755 = vsub.f32 %v1716, %v1741
        %v1756 = vsub.f32 %v1719, %v1744
        %v1757 = vsub.f32 %v1722, %v1747
        %v1758 = vsub.f32 %v1725, %v1750
        %v1759 = vmul.f32 %v1751, 1.442695
        %v1760 = vpow.pop %v1759
        %v1761 = vmul.f32 %v1752, 1.442695
        %v1762 = vpow.pop %v1761
        %v1763 = vmul.f32 %v1753, 1.442695
        %v1764 = vpow.pop %v1763
        %v1765 = vmul.f32 %v1754, 1.442695
        %v1766 = vpow.pop %v1765
        %v1767 = vmul.f32 %v1755, 1.442695
        %v1768 = vpow.pop %v1767
        %v1769 = vmul.f32 %v1756, 1.442695
        %v1770 = vpow.pop %v1769
        %v1771 = vmul.f32 %v1757, 1.442695
        %v1772 = vpow.pop %v1771
        %v1773 = vmul.f32 %v1758, 1.442695
        %v1774 = vpow.pop %v1773
        %v1775 = vsel %vm456, %v1760, 0.0
        %1776 = vadd.xlane.f32.xlu0 %v1775
        %v1777 = vpop.xlane.xlu0 %1776
        %v1778 = vsel %vm456, %v1762, 0.0
        %1779 = vadd.xlane.f32.xlu0 %v1778
        %v1780 = vpop.xlane.xlu0 %1779
        %v1781 = vsel %vm456, %v1764, 0.0
        %1782 = vadd.xlane.f32.xlu0 %v1781
        %v1783 = vpop.xlane.xlu0 %1782
        %v1784 = vsel %vm456, %v1766, 0.0
        %1785 = vadd.xlane.f32.xlu0 %v1784
        %v1786 = vpop.xlane.xlu0 %1785
        %v1787 = vsel %vm456, %v1768, 0.0
        %1788 = vadd.xlane.f32.xlu0 %v1787
        %v1789 = vpop.xlane.xlu0 %1788
        %v1790 = vsel %vm456, %v1770, 0.0
        %1791 = vadd.xlane.f32.xlu0 %v1790
        %v1792 = vpop.xlane.xlu0 %1791
        %v1793 = vsel %vm456, %v1772, 0.0
        %1794 = vadd.xlane.f32.xlu0 %v1793
        %v1795 = vpop.xlane.xlu0 %1794
        %v1796 = vsel %vm456, %v1774, 0.0
        %1797 = vadd.xlane.f32.xlu0 %v1796
        %v1798 = vpop.xlane.xlu0 %1797
        %1799 = vrot.lane.b32.xlu0 %v327, 32
        %v1800 = vpop.permute.xlu0 %1799
        %1801 = vrot.lane.b32.xlu0 %v330, 32
        %v1802 = vpop.permute.xlu0 %1801
        %1803 = vrot.lane.b32.xlu0 %v333, 32
        %v1804 = vpop.permute.xlu0 %1803
        %1805 = vrot.lane.b32.xlu0 %v336, 32
        %v1806 = vpop.permute.xlu0 %1805
        %1807 = vrot.lane.b32.xlu0 %v339, 32
        %v1808 = vpop.permute.xlu0 %1807
        %1809 = vrot.lane.b32.xlu0 %v342, 32
        %v1810 = vpop.permute.xlu0 %1809
        %1811 = vrot.lane.b32.xlu0 %v345, 32
        %v1812 = vpop.permute.xlu0 %1811
        %1813 = vrot.lane.b32.xlu0 %v348, 32
        %v1814 = vpop.permute.xlu0 %1813
        %v1824 = vsel %vm456, %v1760, 0
        %v1827 = vsel %vm456, %v1762, 0
        %v1830 = vsel %vm456, %v1764, 0
        %v1833 = vsel %vm456, %v1766, 0
        %v1836 = vsel %vm456, %v1768, 0
        %v1839 = vsel %vm456, %v1770, 0
        %v1842 = vsel %vm456, %v1772, 0
        %v1845 = vsel %vm456, %v1774, 0
        %1847 = vmatpush.msra.mxu0 0.0
        %1848 = vmatpush.msra.mxu0 0.0
        %1849 = vmatpush.msra.mxu0 0.0
        %1850 = vmatpush.msra.mxu0 0.0
        %1851 = vmatpush.msra.mxu0 0.0
        %1852 = vmatpush.msra.mxu0 0.0
        %1853 = vmatpush.msra.mxu0 0.0
        %1854 = vmatpush.msra.mxu0 0.0
        %1855 = vmatpush.msra.mxu0 %v1814
        %1856 = vmatpush.msra.mxu0 %v1812
        %1857 = vmatpush.msra.mxu0 %v1810
        %1858 = vmatpush.msra.mxu0 %v1808
        %1859 = vmatpush.msra.mxu0 %v1806
        %1860 = vmatpush.msra.mxu0 %v1804
        %1861 = vmatpush.msra.mxu0 %v1802
        %1862 = vmatpush.msra.mxu0 %v1800
        %1863 = vmatmul.f32.gmra.mxu0 %v1824
        %v1864 = vpop.f32.mrf.mxu0
        %v1865 = vadd.f32 0.0, %v1864
        %1866 = vmatmul.f32.gmra.mxu0 %v1827
        %v1867 = vpop.f32.mrf.mxu0
        %v1868 = vadd.f32 0.0, %v1867
        %1869 = vmatmul.f32.gmra.mxu0 %v1830
        %v1870 = vpop.f32.mrf.mxu0
        %v1871 = vadd.f32 0.0, %v1870
        %1872 = vmatmul.f32.gmra.mxu0 %v1833
        %v1873 = vpop.f32.mrf.mxu0
        %v1874 = vadd.f32 0.0, %v1873
        %1875 = vmatmul.f32.gmra.mxu0 %v1836
        %v1876 = vpop.f32.mrf.mxu0
        %v1877 = vadd.f32 0.0, %v1876
        %1878 = vmatmul.f32.gmra.mxu0 %v1839
        %v1879 = vpop.f32.mrf.mxu0
        %v1880 = vadd.f32 0.0, %v1879
        %1881 = vmatmul.f32.gmra.mxu0 %v1842
        %v1882 = vpop.f32.mrf.mxu0
        %v1883 = vadd.f32 0.0, %v1882
        %1884 = vmatmul.f32.gmra.mxu0 %v1845
        %v1885 = vpop.f32.mrf.mxu0
        %v1886 = vadd.f32 0.0, %v1885
        %1887 = vdwg.mxu0
        %v1888 = vrcp.pop %v1777
        %v1889 = vmul.f32 %v1777, %v1888
        %v1890 = vsub.f32 1.0, %v1889
        %v1891 = vmul.f32 %v1888, %v1890
        %v1892 = vadd.f32 %v1888, %v1891
        %vm1893 = vweird.f32 %v1777
        %vm1894 = vweird.f32 %v1888
        %vm1895 = vmor %vm1893, %vm1894
        %v1896 = vsel %vm1895, %v1888, %v1892
        %v1897 = vand.u32 2147483647, %v1777
        %vm1898 = vcmp.eq.f32.partialorder %v1897, 8.507059e+37
        %v1899 = vand.u32 %v1777, 2147483648
        %v1900 = vor.u32 1.1754944e-38, %v1899
        %v1901 = vsel %vm1898, %v1900, %v1896
        %v1902 = vrcp.pop %v1780
        %v1903 = vmul.f32 %v1780, %v1902
        %v1904 = vsub.f32 1.0, %v1903
        %v1905 = vmul.f32 %v1902, %v1904
        %v1906 = vadd.f32 %v1902, %v1905
        %vm1907 = vweird.f32 %v1780
        %vm1908 = vweird.f32 %v1902
        %vm1909 = vmor %vm1907, %vm1908
        %v1910 = vsel %vm1909, %v1902, %v1906
        %v1911 = vand.u32 2147483647, %v1780
        %vm1912 = vcmp.eq.f32.partialorder %v1911, 8.507059e+37
        %v1913 = vand.u32 %v1780, 2147483648
        %v1914 = vor.u32 1.1754944e-38, %v1913
        %v1915 = vsel %vm1912, %v1914, %v1910
        %v1916 = vrcp.pop %v1783
        %v1917 = vmul.f32 %v1783, %v1916
        %v1918 = vsub.f32 1.0, %v1917
        %v1919 = vmul.f32 %v1916, %v1918
        %v1920 = vadd.f32 %v1916, %v1919
        %vm1921 = vweird.f32 %v1783
        %vm1922 = vweird.f32 %v1916
        %vm1923 = vmor %vm1921, %vm1922
        %v1924 = vsel %vm1923, %v1916, %v1920
        %v1925 = vand.u32 2147483647, %v1783
        %vm1926 = vcmp.eq.f32.partialorder %v1925, 8.507059e+37
        %v1927 = vand.u32 %v1783, 2147483648
        %v1928 = vor.u32 1.1754944e-38, %v1927
        %v1929 = vsel %vm1926, %v1928, %v1924
        %v1930 = vrcp.pop %v1786
        %v1931 = vmul.f32 %v1786, %v1930
        %v1932 = vsub.f32 1.0, %v1931
        %v1933 = vmul.f32 %v1930, %v1932
        %v1934 = vadd.f32 %v1930, %v1933
        %vm1935 = vweird.f32 %v1786
        %vm1936 = vweird.f32 %v1930
        %vm1937 = vmor %vm1935, %vm1936
        %v1938 = vsel %vm1937, %v1930, %v1934
        %v1939 = vand.u32 2147483647, %v1786
        %vm1940 = vcmp.eq.f32.partialorder %v1939, 8.507059e+37
        %v1941 = vand.u32 %v1786, 2147483648
        %v1942 = vor.u32 1.1754944e-38, %v1941
        %v1943 = vsel %vm1940, %v1942, %v1938
        %v1944 = vrcp.pop %v1789
        %v1945 = vmul.f32 %v1789, %v1944
        %v1946 = vsub.f32 1.0, %v1945
        %v1947 = vmul.f32 %v1944, %v1946
        %v1948 = vadd.f32 %v1944, %v1947
        %vm1949 = vweird.f32 %v1789
        %vm1950 = vweird.f32 %v1944
        %vm1951 = vmor %vm1949, %vm1950
        %v1952 = vsel %vm1951, %v1944, %v1948
        %v1953 = vand.u32 2147483647, %v1789
        %vm1954 = vcmp.eq.f32.partialorder %v1953, 8.507059e+37
        %v1955 = vand.u32 %v1789, 2147483648
        %v1956 = vor.u32 1.1754944e-38, %v1955
        %v1957 = vsel %vm1954, %v1956, %v1952
        %v1958 = vrcp.pop %v1792
        %v1959 = vmul.f32 %v1792, %v1958
        %v1960 = vsub.f32 1.0, %v1959
        %v1961 = vmul.f32 %v1958, %v1960
        %v1962 = vadd.f32 %v1958, %v1961
        %vm1963 = vweird.f32 %v1792
        %vm1964 = vweird.f32 %v1958
        %vm1965 = vmor %vm1963, %vm1964
        %v1966 = vsel %vm1965, %v1958, %v1962
        %v1967 = vand.u32 2147483647, %v1792
        %vm1968 = vcmp.eq.f32.partialorder %v1967, 8.507059e+37
        %v1969 = vand.u32 %v1792, 2147483648
        %v1970 = vor.u32 1.1754944e-38, %v1969
        %v1971 = vsel %vm1968, %v1970, %v1966
        %v1972 = vrcp.pop %v1795
        %v1973 = vmul.f32 %v1795, %v1972
        %v1974 = vsub.f32 1.0, %v1973
        %v1975 = vmul.f32 %v1972, %v1974
        %v1976 = vadd.f32 %v1972, %v1975
        %vm1977 = vweird.f32 %v1795
        %vm1978 = vweird.f32 %v1972
        %vm1979 = vmor %vm1977, %vm1978
        %v1980 = vsel %vm1979, %v1972, %v1976
        %v1981 = vand.u32 2147483647, %v1795
        %vm1982 = vcmp.eq.f32.partialorder %v1981, 8.507059e+37
        %v1983 = vand.u32 %v1795, 2147483648
        %v1984 = vor.u32 1.1754944e-38, %v1983
        %v1985 = vsel %vm1982, %v1984, %v1980
        %v1986 = vrcp.pop %v1798
        %v1987 = vmul.f32 %v1798, %v1986
        %v1988 = vsub.f32 1.0, %v1987
        %v1989 = vmul.f32 %v1986, %v1988
        %v1990 = vadd.f32 %v1986, %v1989
        %vm1991 = vweird.f32 %v1798
        %vm1992 = vweird.f32 %v1986
        %vm1993 = vmor %vm1991, %vm1992
        %v1994 = vsel %vm1993, %v1986, %v1990
        %v1995 = vand.u32 2147483647, %v1798
        %vm1996 = vcmp.eq.f32.partialorder %v1995, 8.507059e+37
        %v1997 = vand.u32 %v1798, 2147483648
        %v1998 = vor.u32 1.1754944e-38, %v1997
        %v1999 = vsel %vm1996, %v1998, %v1994
        %v2000 = vmul.f32 %v1865, %v1901
        %v2001 = vmul.f32 %v1868, %v1915
        %v2002 = vmul.f32 %v1871, %v1929
        %v2003 = vmul.f32 %v1874, %v1943
        %v2004 = vmul.f32 %v1877, %v1957
        %v2005 = vmul.f32 %v1880, %v1971
        %v2006 = vmul.f32 %v1883, %v1985
        %v2007 = vmul.f32 %v1886, %v1999
        %2016 = vrot.lane.b32.xlu0 %v1148, 32
        %v2017 = vpop.permute.xlu0 %2016
        %2018 = vrot.lane.b32.xlu0 %v1149, 32
        %v2019 = vpop.permute.xlu0 %2018
        %2020 = vrot.lane.b32.xlu0 %v1150, 32
        %v2021 = vpop.permute.xlu0 %2020
        %2022 = vrot.lane.b32.xlu0 %v1151, 32
        %v2023 = vpop.permute.xlu0 %2022
        %2024 = vrot.lane.b32.xlu0 %v1152, 32
        %v2025 = vpop.permute.xlu0 %2024
        %2026 = vrot.lane.b32.xlu0 %v1153, 32
        %v2027 = vpop.permute.xlu0 %2026
        %2028 = vrot.lane.b32.xlu0 %v1154, 32
        %v2029 = vpop.permute.xlu0 %2028
        %2030 = vrot.lane.b32.xlu0 %v1155, 32
        %v2031 = vpop.permute.xlu0 %2030
        %2048 = vrot.lane.b32.xlu0 %v1574, 64
        %v2049 = vpop.permute.xlu0 %2048
        %2050 = vrot.lane.b32.xlu0 %v1575, 64
        %v2051 = vpop.permute.xlu0 %2050
        %2052 = vrot.lane.b32.xlu0 %v1576, 64
        %v2053 = vpop.permute.xlu0 %2052
        %2054 = vrot.lane.b32.xlu0 %v1577, 64
        %v2055 = vpop.permute.xlu0 %2054
        %2056 = vrot.lane.b32.xlu0 %v1578, 64
        %v2057 = vpop.permute.xlu0 %2056
        %2058 = vrot.lane.b32.xlu0 %v1579, 64
        %v2059 = vpop.permute.xlu0 %2058
        %2060 = vrot.lane.b32.xlu0 %v1580, 64
        %v2061 = vpop.permute.xlu0 %2060
        %2062 = vrot.lane.b32.xlu0 %v1581, 64
        %v2063 = vpop.permute.xlu0 %2062
        %2080 = vrot.lane.b32.xlu0 %v2000, 96
        %v2081 = vpop.permute.xlu0 %2080
        %2082 = vrot.lane.b32.xlu0 %v2001, 96
        %v2083 = vpop.permute.xlu0 %2082
        %2084 = vrot.lane.b32.xlu0 %v2002, 96
        %v2085 = vpop.permute.xlu0 %2084
        %2086 = vrot.lane.b32.xlu0 %v2003, 96
        %v2087 = vpop.permute.xlu0 %2086
        %2088 = vrot.lane.b32.xlu0 %v2004, 96
        %v2089 = vpop.permute.xlu0 %2088
        %2090 = vrot.lane.b32.xlu0 %v2005, 96
        %v2091 = vpop.permute.xlu0 %2090
        %2092 = vrot.lane.b32.xlu0 %v2006, 96
        %v2093 = vpop.permute.xlu0 %2092
        %2094 = vrot.lane.b32.xlu0 %v2007, 96
        %v2095 = vpop.permute.xlu0 %2094
        %v2104 = vsel %vm366, %v706, %v2017
        %v2105 = vsel %vm366, %v707, %v2019
        %v2106 = vsel %vm366, %v708, %v2021
        %v2107 = vsel %vm366, %v709, %v2023
        %v2108 = vsel %vm366, %v710, %v2025
        %v2109 = vsel %vm366, %v711, %v2027
        %v2110 = vsel %vm366, %v712, %v2029
        %v2111 = vsel %vm366, %v713, %v2031
        %v2112 = vsel %vm456, %v2104, %v2049
        %v2113 = vsel %vm456, %v2105, %v2051
        %v2114 = vsel %vm456, %v2106, %v2053
        %v2115 = vsel %vm456, %v2107, %v2055
        %v2116 = vsel %vm456, %v2108, %v2057
        %v2117 = vsel %vm456, %v2109, %v2059
        %v2118 = vsel %vm456, %v2110, %v2061
        %v2119 = vsel %vm456, %v2111, %v2063
        %vm2120 = vcmask 785408
        %v2121 = vsel %vm2120, %v2112, %v2081
        %v2122 = vsel %vm2120, %v2113, %v2083
        %v2123 = vsel %vm2120, %v2114, %v2085
        %v2124 = vsel %vm2120, %v2115, %v2087
        %v2125 = vsel %vm2120, %v2116, %v2089
        %v2126 = vsel %vm2120, %v2117, %v2091
        %v2127 = vsel %vm2120, %v2118, %v2093
        %v2128 = vsel %vm2120, %v2119, %v2095
        %2129 = vst [vmem:[%s163] sm:$0xff] %v2121
        %2130 = vst [vmem:[%s163 + $0x8] sm:$0xff] %v2122
        %2131 = vst [vmem:[%s163 + $0x10] sm:$0xff] %v2123
        %2132 = vst [vmem:[%s163 + $0x18] sm:$0xff] %v2124
        %2133 = vst [vmem:[%s163 + $0x20] sm:$0xff] %v2125
        %2134 = vst [vmem:[%s163 + $0x28] sm:$0xff] %v2126
        %2135 = vst [vmem:[%s163 + $0x30] sm:$0xff] %v2127
        %2136 = vst [vmem:[%s163 + $0x38] sm:$0xff] %v2128
        %s2137 = sand.u32 %s93, 1
        %s2138 = scalar_lea.sflag [#allocation3], %s2137
        %s2139 = sand.u32 %s93, 1
        %s2140 = smul.addr %s2139, 64
        %s2141 = scalar_lea.vmem [#allocation2], %s2140
        // Predicated region
        $region33: #{tpu_custom_call.1} parent=31 // pred_check
          %p2142 = pneg %p103
        $region34: #{tpu_custom_call.1} parent=31 // pred_check_branch
          %2144 = sbr.rel (%p2142) target = $region36
        $region35: #{tpu_custom_call.1} parent=31 // pred_region
          %2146 = vsyncadd %s2138, 0
          %s2147 = smul.addr %s17, 8
          %s2148 = smul.addr %s2147, 8
          %s2149 = scalar_lea.hbm %s3, %s2148
          %s2150 = sshll.u32 %s2141, 4
          %s2151 = int_to_ptr.vmem [resolvable:$true] %s2150
          %s2152 = sshll.u32 %s2149, 4
          %s2153 = int_to_ptr.hbm [resolvable:$true] %s2152
          %2158 = dma.vmem_to_hbm [thread:$0]  %s2151, 1024, %s2153, %s2138, 128, 128, 8
        $region36: #{tpu_custom_call.1} parent=31 // pred_fallthru
          _
      $region32: #{tpu_custom_call.1} parent=5 // pred_fallthru
        _
      %p2159 = scmp.le.s32.totalorder 2, %s12
      // Predicated region
      $region37: #{tpu_custom_call.1} parent=5 // pred_check
        %p2160 = pneg %p2159
      $region38: #{tpu_custom_call.1} parent=5 // pred_check_branch
        %2162 = sbr.rel (%p2160) target = $region40
      $region39: #{tpu_custom_call.1} parent=5 // pred_region
        %s2163 = ssub.s32 %s12, 2
        // Predicated region
        $region41: #{tpu_custom_call.1} parent=39 // pred_check
          %p2164 = pneg %p109
        $region42: #{tpu_custom_call.1} parent=39 // pred_check_branch
          %2166 = sbr.rel (%p2164) target = $region44
        $region43: #{tpu_custom_call.1} parent=39 // pred_region
          %s2167 = sand.u32 %s94, 1
          %s2168 = scalar_lea.sflag [#allocation3], %s2167
          %s2169 = sand.u32 %s94, 1
          %s2170 = smul.addr %s2169, 64
          %s2171 = scalar_lea.vmem [#allocation2], %s2170
          %2173 = dma.done %s2168, 1024
        $region44: #{tpu_custom_call.1} parent=39 // pred_fallthru
          _
      $region40: #{tpu_custom_call.1} parent=5 // pred_fallthru
        _
    $region6: #{tpu_custom_call.1} parent=1 // loop_footer
      %s16 = sadd.s32 1, %s12
    $region7: #{tpu_custom_call.1} parent=1 // loop_footer_branch
      %11 = sbr.rel target = $region3
    $region8: #{tpu_custom_call.1} parent=1 // loop_exit
      _
    %2174 = vsyncpa [#allocation3], 1
    %s2175 = scalar_lea.sflag [#allocation3], 1
    %2176 = vsyncpa %s2175, 1

</llo_original>
